<compile_context>
chip_gen: v7x
topology: tpu7x:2x2x1
jax: 0.10.0
libtpu: 0.0.40
codegen_flags: <defaults>
</compile_context>

<pallas_src>
import functools

import jax
import jax.numpy as jnp
from jax.experimental import pallas as pl
from jax.experimental.pallas import tpu as pltpu

_SQRT_HALF = 0.7071067811865476
_GELU_C = 0.7978845608028654      # sqrt(2/pi)
_GELU_K = 0.044715
_BN_EPS = 1e-5
_LANE = 128
_NUM_HIDDEN = 6                   # number of mlpLayer blocks in the module
_MAX_BATCH_TILE = 2048            # rows per grid step for large batches


def _round_up(v, m):
    return ((v + m - 1) // m) * m


def _elementwise_dtype():
    """bf16 elementwise on v6e/v7x (native bf16 VALU/EUP); f32 on older chips."""
    try:
        kind = jax.devices()[0].device_kind.lower()
    except Exception:
        return jnp.float32
    if any(v in kind for v in ("v3", "v4", "v5")):
        return jnp.float32
    return jnp.bfloat16


# ------------------------------ Pallas kernel -------------------------------

def _mlp_fused_kernel(*refs, ew_dtype):
    """refs = (x, w_in, b_in, [w_l, shift_l] * 6, w_out, b_out, out)."""
    x_ref = refs[0]
    w_in_ref, b_in_ref = refs[1], refs[2]
    layer_refs = refs[3:3 + 2 * _NUM_HIDDEN]
    w_out_ref = refs[3 + 2 * _NUM_HIDDEN]
    b_out_ref = refs[4 + 2 * _NUM_HIDDEN]
    o_ref = refs[-1]

    def dot_bf16(h, w_ref):
        # bf16 MXU inputs, f32 accumulation.
        return jnp.dot(h.astype(jnp.bfloat16), w_ref[...],
                       preferred_element_type=jnp.float32)

    # input_layer (input BatchNorm1d folded into w_in / b_in; x already bf16)
    h = dot_bf16(x_ref[...], w_in_ref) + b_in_ref[...]

    # 6x mlpLayer: Dropout(identity) -> Linear -> BatchNorm1d -> GELU.
    # BN scale and the previous GELU's 0.5 are folded into the weight columns,
    # bias + BN shift fused into shift_l.  tanh-approx GELU (EUP) without the
    # leading 0.5: that factor is folded into the NEXT weight matrix / W_out.
    for li in range(_NUM_HIDDEN):
        y = (dot_bf16(h, layer_refs[2 * li]) + layer_refs[2 * li + 1][...]
             ).astype(ew_dtype)
        inner = y + _GELU_K * (y * y * y)
        h = y * (1.0 + jnp.tanh(_GELU_C * inner))

    # out_fc (last GELU's 0.5 folded into w_out; lane-dense 128-padded output,
    # stored bf16 to halve HBM writeback, sliced + upcast in the wrapper)
    o_ref[...] = (dot_bf16(h, w_out_ref) + b_out_ref[...]).astype(o_ref.dtype)


# ------------------------------ forward wrapper ------------------------------

@functools.partial(jax.jit, static_argnums=(2,))
def mlp_forward(x, flat, out_class):
    """x: (N, in_feature) f32.  flat: preprocessed weights (see prepare_params)."""
    n, in_feature = x.shape
    out_pad = flat[-1].shape[1]                   # padded output width (>=128)

    # >=2 grid steps so v7x's second TensorCore gets work; <=2048 rows/tile to
    # amortize per-step overhead while staying well inside scoped VMEM.
    if n <= 16:
        rows = n
    else:
        rows = min(_MAX_BATCH_TILE, _round_up(-(-n // 2), 16))

    ew_dtype = _elementwise_dtype()
    kernel = functools.partial(_mlp_fused_kernel, ew_dtype=ew_dtype)

    in_specs = [pl.BlockSpec((rows, in_feature), lambda i: (i, 0))]
    # All weights / shift rows: constant block index -> VMEM-resident across steps.
    in_specs += [pl.BlockSpec(a.shape, lambda i: (0, 0)) for a in flat]

    out_padded = pl.pallas_call(
        kernel,
        out_shape=jax.ShapeDtypeStruct((n, out_pad), jnp.bfloat16),
        grid_spec=pltpu.PrefetchScalarGridSpec(
            num_scalar_prefetch=0,
            grid=(pl.cdiv(n, rows),),
            in_specs=in_specs,
            out_specs=pl.BlockSpec((rows, out_pad), lambda i: (i, 0)),
        ),
        compiler_params=pltpu.CompilerParams(
            dimension_semantics=("parallel",),
            vmem_limit_bytes=48 * 1024 * 1024),
    )(x.astype(jnp.bfloat16), *flat)
    return out_padded[:, :out_class].astype(jnp.float32)


# ------------------------- parameter initialization -------------------------

def _init_linear(key, in_dim, out_dim):
    # PyTorch nn.Linear default: U(-1/sqrt(in_dim), 1/sqrt(in_dim))
    kw, kb = jax.random.split(key)
    bound = 1.0 / jnp.sqrt(jnp.float32(in_dim))
    w = jax.random.uniform(kw, (in_dim, out_dim), jnp.float32, -bound, bound)
    b = jax.random.uniform(kb, (out_dim,), jnp.float32, -bound, bound)
    return w, b  # stored as (in, out): kernels compute x @ W


def _init_bn(key, dim):
    kg, kb, km, kv = jax.random.split(key, 4)
    gamma = 1.0 + 0.1 * jax.random.normal(kg, (dim,), jnp.float32)
    beta = 0.1 * jax.random.normal(kb, (dim,), jnp.float32)
    mean = 0.1 * jax.random.normal(km, (dim,), jnp.float32)
    var = 1.0 + 0.1 * jax.random.uniform(kv, (dim,), jnp.float32)
    return gamma, beta, mean, var


def init_params(key, in_feature, out_class):
    keys = jax.random.split(key, 16)
    params = {"bn0": _init_bn(keys[0], in_feature)}
    params["w_in"], params["b_in"] = _init_linear(keys[1], in_feature, 32)

    layer_dims = [(32, 64), (64, 128), (128, 256), (256, 128), (128, 64), (64, 32)]
    layers = []
    for i, (di, do) in enumerate(layer_dims):
        w, b = _init_linear(keys[2 + 2 * i], di, do)
        gamma, beta, mean, var = _init_bn(keys[3 + 2 * i], do)
        layers.append({"w": w, "b": b, "gamma": gamma, "beta": beta,
                       "mean": mean, "var": var})
    params["layers"] = layers
    params["w_out"], params["b_out"] = _init_linear(keys[14], 32, out_class)
    return params


def prepare_params(params):
    """One-time folding of eval-mode BN, biases and GELU 0.5 into bf16 weights."""
    g0, be0, m0, v0 = params["bn0"]
    s0 = g0 / jnp.sqrt(v0 + _BN_EPS)                  # input-BN scale
    h0 = be0 - m0 * s0                                # input-BN shift
    w_in = (s0[:, None] * params["w_in"]).astype(jnp.bfloat16)
    b_in = (h0 @ params["w_in"] + params["b_in"]).astype(jnp.float32)[None, :]

    flat = [w_in, b_in]
    for i, lyr in enumerate(params["layers"]):
        scale = lyr["gamma"] / jnp.sqrt(lyr["var"] + _BN_EPS)
        shift = lyr["beta"] - lyr["mean"] * scale + lyr["b"] * scale
        gelu_half = 0.5 if i > 0 else 1.0             # previous layer's GELU 0.5
        flat.append((gelu_half * lyr["w"] * scale[None, :]).astype(jnp.bfloat16))
        flat.append(shift.astype(jnp.float32)[None, :])

    w_out, b_out = params["w_out"], params["b_out"]
    out_class = int(w_out.shape[1])
    out_pad = _round_up(out_class, _LANE)             # lane-dense output
    # Fold the last hidden layer's GELU 0.5 into W_out; zero-pad to 128 lanes.
    w_out_p = jnp.zeros((w_out.shape[0], out_pad), jnp.float32
                        ).at[:, :out_class].set(0.5 * w_out)
    b_out_p = jnp.zeros((out_pad,), jnp.float32).at[:out_class].set(b_out)
    flat.append(w_out_p.astype(jnp.bfloat16))
    flat.append(b_out_p[None, :])

    return tuple(flat), out_class


# ------------------------------ plain-JAX reference --------------------------

def mlp_forward_reference(x, params):
    hp = jax.lax.Precision.HIGHEST
    g0, be0, m0, v0 = params["bn0"]
    x = (x - m0) / jnp.sqrt(v0 + _BN_EPS) * g0 + be0
    x = jnp.dot(x, params["w_in"], precision=hp) + params["b_in"]
    for lyr in params["layers"]:
        y = jnp.dot(x, lyr["w"], precision=hp) + lyr["b"]
        y = (y - lyr["mean"]) / jnp.sqrt(lyr["var"] + _BN_EPS) * lyr["gamma"] + lyr["beta"]
        x = 0.5 * y * (1.0 + jax.lax.erf(y * _SQRT_HALF))   # exact-erf GELU
    return jnp.dot(x, params["w_out"], precision=hp) + params["b_out"]


# TODO(synk): training-mode Dropout RNG masks and batch-statistic BatchNorm are
# not reproduced; eval-mode semantics are implemented instead.  LogSoftmax is
# defined in __init__ but never applied in forward(), so it is omitted.

if __name__ == "__main__":
    # N=48 exercises a 2-step grid (rows=32) including a partial last tile.
    N, IN_FEATURE, OUT_CLASS = 48, 20, 10
    key = jax.random.PRNGKey(0)
    kx, kp = jax.random.split(key)
    x = jax.random.normal(kx, (N, IN_FEATURE), jnp.float32)
    params = init_params(kp, IN_FEATURE, OUT_CLASS)
    flat, out_class = prepare_params(params)

    out = jax.block_until_ready(mlp_forward(x, flat, out_class))
    ref = jax.block_until_ready(mlp_forward_reference(x, params))

    assert out.shape == (N, OUT_CLASS)
    # bf16 MXU/elementwise/output + tanh-approx GELU vs exact-erf f32 reference.
    assert jnp.allclose(out, ref, rtol=2e-2, atol=2e-2), "mismatch vs JAX reference"
    print("KERNEL_OK")
</pallas_src>

<mosaic_0001>
module attributes {stable_mosaic.version = 11 : i64} {
  func.func @_mlp_fused_kernel(%arg0: i32, %arg1: memref<32x20xbf16, #tpu.memory_space<vmem>>, %arg2: memref<20x32xbf16, #tpu.memory_space<vmem>>, %arg3: memref<1x32xf32, #tpu.memory_space<vmem>>, %arg4: memref<32x64xbf16, #tpu.memory_space<vmem>>, %arg5: memref<1x64xf32, #tpu.memory_space<vmem>>, %arg6: memref<64x128xbf16, #tpu.memory_space<vmem>>, %arg7: memref<1x128xf32, #tpu.memory_space<vmem>>, %arg8: memref<128x256xbf16, #tpu.memory_space<vmem>>, %arg9: memref<1x256xf32, #tpu.memory_space<vmem>>, %arg10: memref<256x128xbf16, #tpu.memory_space<vmem>>, %arg11: memref<1x128xf32, #tpu.memory_space<vmem>>, %arg12: memref<128x64xbf16, #tpu.memory_space<vmem>>, %arg13: memref<1x64xf32, #tpu.memory_space<vmem>>, %arg14: memref<64x32xbf16, #tpu.memory_space<vmem>>, %arg15: memref<1x32xf32, #tpu.memory_space<vmem>>, %arg16: memref<32x128xbf16, #tpu.memory_space<vmem>>, %arg17: memref<1x128xf32, #tpu.memory_space<vmem>>, %arg18: memref<32x128xbf16, #tpu.memory_space<vmem>>) attributes {dimension_semantics = [#tpu.dimension_semantics<parallel>], iteration_bounds = array<i64: 2>, scalar_prefetch = 0 : i64, scratch_operands = 0 : i64, tpu.core_type = #tpu.core_type<tc>, window_params = [{transform_indices = @transform_0, window_bounds = array<i64: 32, 20>}, {pipeline_mode = #tpu.pipeline_mode<synchronous>, transform_indices = @transform_1, window_bounds = array<i64: 20, 32>}, {pipeline_mode = #tpu.pipeline_mode<synchronous>, transform_indices = @transform_2, window_bounds = array<i64: 1, 32>}, {pipeline_mode = #tpu.pipeline_mode<synchronous>, transform_indices = @transform_3, window_bounds = array<i64: 32, 64>}, {pipeline_mode = #tpu.pipeline_mode<synchronous>, transform_indices = @transform_4, window_bounds = array<i64: 1, 64>}, {pipeline_mode = #tpu.pipeline_mode<synchronous>, transform_indices = @transform_5, window_bounds = array<i64: 64, 128>}, {pipeline_mode = #tpu.pipeline_mode<synchronous>, transform_indices = @transform_6, window_bounds = array<i64: 1, 128>}, {pipeline_mode = #tpu.pipeline_mode<synchronous>, transform_indices = @transform_7, window_bounds = array<i64: 128, 256>}, {pipeline_mode = #tpu.pipeline_mode<synchronous>, transform_indices = @transform_8, window_bounds = array<i64: 1, 256>}, {pipeline_mode = #tpu.pipeline_mode<synchronous>, transform_indices = @transform_9, window_bounds = array<i64: 256, 128>}, {pipeline_mode = #tpu.pipeline_mode<synchronous>, transform_indices = @transform_10, window_bounds = array<i64: 1, 128>}, {pipeline_mode = #tpu.pipeline_mode<synchronous>, transform_indices = @transform_11, window_bounds = array<i64: 128, 64>}, {pipeline_mode = #tpu.pipeline_mode<synchronous>, transform_indices = @transform_12, window_bounds = array<i64: 1, 64>}, {pipeline_mode = #tpu.pipeline_mode<synchronous>, transform_indices = @transform_13, window_bounds = array<i64: 64, 32>}, {pipeline_mode = #tpu.pipeline_mode<synchronous>, transform_indices = @transform_14, window_bounds = array<i64: 1, 32>}, {pipeline_mode = #tpu.pipeline_mode<synchronous>, transform_indices = @transform_15, window_bounds = array<i64: 32, 128>}, {pipeline_mode = #tpu.pipeline_mode<synchronous>, transform_indices = @transform_16, window_bounds = array<i64: 1, 128>}, {transform_indices = @transform_17, window_bounds = array<i64: 32, 128>}]} {
    %c0 = arith.constant 0 : index
    %c0_0 = arith.constant 0 : index
    %0 = vector.load %arg1[%c0, %c0_0] : memref<32x20xbf16, #tpu.memory_space<vmem>>, vector<32x20xbf16>
    %c0_1 = arith.constant 0 : index
    %c0_2 = arith.constant 0 : index
    %1 = vector.load %arg2[%c0_1, %c0_2] : memref<20x32xbf16, #tpu.memory_space<vmem>>, vector<20x32xbf16>
    %cst = arith.constant dense<0.000000e+00> : vector<32x32xf32>
    %2 = tpu.matmul %0, %1, %cst {dimension_numbers = #tpu.dot_dimension_numbers<[1], [0], [0], [1], [0, 0, 1, 1], [], []>} : vector<32x20xbf16>, vector<20x32xbf16>, vector<32x32xf32> -> vector<32x32xf32>
    %c0_3 = arith.constant 0 : index
    %c0_4 = arith.constant 0 : index
    %3 = vector.load %arg3[%c0_3, %c0_4] : memref<1x32xf32, #tpu.memory_space<vmem>>, vector<1x32xf32>
    %4 = vector.broadcast %3 : vector<1x32xf32> to vector<32x32xf32>
    %5 = arith.addf %2, %4 : vector<32x32xf32>
    %6 = arith.truncf %5 : vector<32x32xf32> to vector<32x32xbf16>
    %c0_5 = arith.constant 0 : index
    %c0_6 = arith.constant 0 : index
    %7 = vector.load %arg4[%c0_5, %c0_6] : memref<32x64xbf16, #tpu.memory_space<vmem>>, vector<32x64xbf16>
    %cst_7 = arith.constant dense<0.000000e+00> : vector<32x64xf32>
    %8 = tpu.matmul %6, %7, %cst_7 {dimension_numbers = #tpu.dot_dimension_numbers<[1], [0], [0], [1], [0, 0, 1, 1], [], []>} : vector<32x32xbf16>, vector<32x64xbf16>, vector<32x64xf32> -> vector<32x64xf32>
    %c0_8 = arith.constant 0 : index
    %c0_9 = arith.constant 0 : index
    %9 = vector.load %arg5[%c0_8, %c0_9] : memref<1x64xf32, #tpu.memory_space<vmem>>, vector<1x64xf32>
    %10 = vector.broadcast %9 : vector<1x64xf32> to vector<32x64xf32>
    %11 = arith.addf %8, %10 : vector<32x64xf32>
    %12 = arith.truncf %11 : vector<32x64xf32> to vector<32x64xbf16>
    %13 = arith.mulf %12, %12 : vector<32x64xbf16>
    %14 = arith.mulf %13, %12 : vector<32x64xbf16>
    %cst_10 = arith.constant 4.467770e-02 : bf16
    %15 = vector.broadcast %cst_10 : bf16 to vector<32x64xbf16>
    %16 = arith.mulf %15, %14 : vector<32x64xbf16>
    %17 = arith.addf %12, %16 : vector<32x64xbf16>
    %cst_11 = arith.constant 7.968750e-01 : bf16
    %18 = vector.broadcast %cst_11 : bf16 to vector<32x64xbf16>
    %19 = arith.mulf %18, %17 : vector<32x64xbf16>
    %20 = math.tanh %19 : vector<32x64xbf16>
    %cst_12 = arith.constant 1.000000e+00 : bf16
    %21 = vector.broadcast %cst_12 : bf16 to vector<32x64xbf16>
    %22 = arith.addf %21, %20 : vector<32x64xbf16>
    %23 = arith.mulf %12, %22 : vector<32x64xbf16>
    %c0_13 = arith.constant 0 : index
    %c0_14 = arith.constant 0 : index
    %24 = vector.load %arg6[%c0_13, %c0_14] : memref<64x128xbf16, #tpu.memory_space<vmem>>, vector<64x128xbf16>
    %cst_15 = arith.constant dense<0.000000e+00> : vector<32x128xf32>
    %25 = tpu.matmul %23, %24, %cst_15 {dimension_numbers = #tpu.dot_dimension_numbers<[1], [0], [0], [1], [0, 0, 1, 1], [], []>} : vector<32x64xbf16>, vector<64x128xbf16>, vector<32x128xf32> -> vector<32x128xf32>
    %c0_16 = arith.constant 0 : index
    %c0_17 = arith.constant 0 : index
    %26 = vector.load %arg7[%c0_16, %c0_17] : memref<1x128xf32, #tpu.memory_space<vmem>>, vector<1x128xf32>
    %27 = vector.broadcast %26 : vector<1x128xf32> to vector<32x128xf32>
    %28 = arith.addf %25, %27 : vector<32x128xf32>
    %29 = arith.truncf %28 : vector<32x128xf32> to vector<32x128xbf16>
    %30 = arith.mulf %29, %29 : vector<32x128xbf16>
    %31 = arith.mulf %30, %29 : vector<32x128xbf16>
    %cst_18 = arith.constant 4.467770e-02 : bf16
    %32 = vector.broadcast %cst_18 : bf16 to vector<32x128xbf16>
    %33 = arith.mulf %32, %31 : vector<32x128xbf16>
    %34 = arith.addf %29, %33 : vector<32x128xbf16>
    %cst_19 = arith.constant 7.968750e-01 : bf16
    %35 = vector.broadcast %cst_19 : bf16 to vector<32x128xbf16>
    %36 = arith.mulf %35, %34 : vector<32x128xbf16>
    %37 = math.tanh %36 : vector<32x128xbf16>
    %cst_20 = arith.constant 1.000000e+00 : bf16
    %38 = vector.broadcast %cst_20 : bf16 to vector<32x128xbf16>
    %39 = arith.addf %38, %37 : vector<32x128xbf16>
    %40 = arith.mulf %29, %39 : vector<32x128xbf16>
    %c0_21 = arith.constant 0 : index
    %c0_22 = arith.constant 0 : index
    %41 = vector.load %arg8[%c0_21, %c0_22] : memref<128x256xbf16, #tpu.memory_space<vmem>>, vector<128x256xbf16>
    %cst_23 = arith.constant dense<0.000000e+00> : vector<32x256xf32>
    %42 = tpu.matmul %40, %41, %cst_23 {dimension_numbers = #tpu.dot_dimension_numbers<[1], [0], [0], [1], [0, 0, 1, 1], [], []>} : vector<32x128xbf16>, vector<128x256xbf16>, vector<32x256xf32> -> vector<32x256xf32>
    %c0_24 = arith.constant 0 : index
    %c0_25 = arith.constant 0 : index
    %43 = vector.load %arg9[%c0_24, %c0_25] : memref<1x256xf32, #tpu.memory_space<vmem>>, vector<1x256xf32>
    %44 = vector.broadcast %43 : vector<1x256xf32> to vector<32x256xf32>
    %45 = arith.addf %42, %44 : vector<32x256xf32>
    %46 = arith.truncf %45 : vector<32x256xf32> to vector<32x256xbf16>
    %47 = arith.mulf %46, %46 : vector<32x256xbf16>
    %48 = arith.mulf %47, %46 : vector<32x256xbf16>
    %cst_26 = arith.constant 4.467770e-02 : bf16
    %49 = vector.broadcast %cst_26 : bf16 to vector<32x256xbf16>
    %50 = arith.mulf %49, %48 : vector<32x256xbf16>
    %51 = arith.addf %46, %50 : vector<32x256xbf16>
    %cst_27 = arith.constant 7.968750e-01 : bf16
    %52 = vector.broadcast %cst_27 : bf16 to vector<32x256xbf16>
    %53 = arith.mulf %52, %51 : vector<32x256xbf16>
    %54 = math.tanh %53 : vector<32x256xbf16>
    %cst_28 = arith.constant 1.000000e+00 : bf16
    %55 = vector.broadcast %cst_28 : bf16 to vector<32x256xbf16>
    %56 = arith.addf %55, %54 : vector<32x256xbf16>
    %57 = arith.mulf %46, %56 : vector<32x256xbf16>
    %c0_29 = arith.constant 0 : index
    %c0_30 = arith.constant 0 : index
    %58 = vector.load %arg10[%c0_29, %c0_30] : memref<256x128xbf16, #tpu.memory_space<vmem>>, vector<256x128xbf16>
    %cst_31 = arith.constant dense<0.000000e+00> : vector<32x128xf32>
    %59 = tpu.matmul %57, %58, %cst_31 {dimension_numbers = #tpu.dot_dimension_numbers<[1], [0], [0], [1], [0, 0, 1, 1], [], []>} : vector<32x256xbf16>, vector<256x128xbf16>, vector<32x128xf32> -> vector<32x128xf32>
    %c0_32 = arith.constant 0 : index
    %c0_33 = arith.constant 0 : index
    %60 = vector.load %arg11[%c0_32, %c0_33] : memref<1x128xf32, #tpu.memory_space<vmem>>, vector<1x128xf32>
    %61 = vector.broadcast %60 : vector<1x128xf32> to vector<32x128xf32>
    %62 = arith.addf %59, %61 : vector<32x128xf32>
    %63 = arith.truncf %62 : vector<32x128xf32> to vector<32x128xbf16>
    %64 = arith.mulf %63, %63 : vector<32x128xbf16>
    %65 = arith.mulf %64, %63 : vector<32x128xbf16>
    %cst_34 = arith.constant 4.467770e-02 : bf16
    %66 = vector.broadcast %cst_34 : bf16 to vector<32x128xbf16>
    %67 = arith.mulf %66, %65 : vector<32x128xbf16>
    %68 = arith.addf %63, %67 : vector<32x128xbf16>
    %cst_35 = arith.constant 7.968750e-01 : bf16
    %69 = vector.broadcast %cst_35 : bf16 to vector<32x128xbf16>
    %70 = arith.mulf %69, %68 : vector<32x128xbf16>
    %71 = math.tanh %70 : vector<32x128xbf16>
    %cst_36 = arith.constant 1.000000e+00 : bf16
    %72 = vector.broadcast %cst_36 : bf16 to vector<32x128xbf16>
    %73 = arith.addf %72, %71 : vector<32x128xbf16>
    %74 = arith.mulf %63, %73 : vector<32x128xbf16>
    %c0_37 = arith.constant 0 : index
    %c0_38 = arith.constant 0 : index
    %75 = vector.load %arg12[%c0_37, %c0_38] : memref<128x64xbf16, #tpu.memory_space<vmem>>, vector<128x64xbf16>
    %cst_39 = arith.constant dense<0.000000e+00> : vector<32x64xf32>
    %76 = tpu.matmul %74, %75, %cst_39 {dimension_numbers = #tpu.dot_dimension_numbers<[1], [0], [0], [1], [0, 0, 1, 1], [], []>} : vector<32x128xbf16>, vector<128x64xbf16>, vector<32x64xf32> -> vector<32x64xf32>
    %c0_40 = arith.constant 0 : index
    %c0_41 = arith.constant 0 : index
    %77 = vector.load %arg13[%c0_40, %c0_41] : memref<1x64xf32, #tpu.memory_space<vmem>>, vector<1x64xf32>
    %78 = vector.broadcast %77 : vector<1x64xf32> to vector<32x64xf32>
    %79 = arith.addf %76, %78 : vector<32x64xf32>
    %80 = arith.truncf %79 : vector<32x64xf32> to vector<32x64xbf16>
    %81 = arith.mulf %80, %80 : vector<32x64xbf16>
    %82 = arith.mulf %81, %80 : vector<32x64xbf16>
    %cst_42 = arith.constant 4.467770e-02 : bf16
    %83 = vector.broadcast %cst_42 : bf16 to vector<32x64xbf16>
    %84 = arith.mulf %83, %82 : vector<32x64xbf16>
    %85 = arith.addf %80, %84 : vector<32x64xbf16>
    %cst_43 = arith.constant 7.968750e-01 : bf16
    %86 = vector.broadcast %cst_43 : bf16 to vector<32x64xbf16>
    %87 = arith.mulf %86, %85 : vector<32x64xbf16>
    %88 = math.tanh %87 : vector<32x64xbf16>
    %cst_44 = arith.constant 1.000000e+00 : bf16
    %89 = vector.broadcast %cst_44 : bf16 to vector<32x64xbf16>
    %90 = arith.addf %89, %88 : vector<32x64xbf16>
    %91 = arith.mulf %80, %90 : vector<32x64xbf16>
    %c0_45 = arith.constant 0 : index
    %c0_46 = arith.constant 0 : index
    %92 = vector.load %arg14[%c0_45, %c0_46] : memref<64x32xbf16, #tpu.memory_space<vmem>>, vector<64x32xbf16>
    %cst_47 = arith.constant dense<0.000000e+00> : vector<32x32xf32>
    %93 = tpu.matmul %91, %92, %cst_47 {dimension_numbers = #tpu.dot_dimension_numbers<[1], [0], [0], [1], [0, 0, 1, 1], [], []>} : vector<32x64xbf16>, vector<64x32xbf16>, vector<32x32xf32> -> vector<32x32xf32>
    %c0_48 = arith.constant 0 : index
    %c0_49 = arith.constant 0 : index
    %94 = vector.load %arg15[%c0_48, %c0_49] : memref<1x32xf32, #tpu.memory_space<vmem>>, vector<1x32xf32>
    %95 = vector.broadcast %94 : vector<1x32xf32> to vector<32x32xf32>
    %96 = arith.addf %93, %95 : vector<32x32xf32>
    %97 = arith.truncf %96 : vector<32x32xf32> to vector<32x32xbf16>
    %98 = arith.mulf %97, %97 : vector<32x32xbf16>
    %99 = arith.mulf %98, %97 : vector<32x32xbf16>
    %cst_50 = arith.constant 4.467770e-02 : bf16
    %100 = vector.broadcast %cst_50 : bf16 to vector<32x32xbf16>
    %101 = arith.mulf %100, %99 : vector<32x32xbf16>
    %102 = arith.addf %97, %101 : vector<32x32xbf16>
    %cst_51 = arith.constant 7.968750e-01 : bf16
    %103 = vector.broadcast %cst_51 : bf16 to vector<32x32xbf16>
    %104 = arith.mulf %103, %102 : vector<32x32xbf16>
    %105 = math.tanh %104 : vector<32x32xbf16>
    %cst_52 = arith.constant 1.000000e+00 : bf16
    %106 = vector.broadcast %cst_52 : bf16 to vector<32x32xbf16>
    %107 = arith.addf %106, %105 : vector<32x32xbf16>
    %108 = arith.mulf %97, %107 : vector<32x32xbf16>
    %c0_53 = arith.constant 0 : index
    %c0_54 = arith.constant 0 : index
    %109 = vector.load %arg16[%c0_53, %c0_54] : memref<32x128xbf16, #tpu.memory_space<vmem>>, vector<32x128xbf16>
    %cst_55 = arith.constant dense<0.000000e+00> : vector<32x128xf32>
    %110 = tpu.matmul %108, %109, %cst_55 {dimension_numbers = #tpu.dot_dimension_numbers<[1], [0], [0], [1], [0, 0, 1, 1], [], []>} : vector<32x32xbf16>, vector<32x128xbf16>, vector<32x128xf32> -> vector<32x128xf32>
    %c0_56 = arith.constant 0 : index
    %c0_57 = arith.constant 0 : index
    %111 = vector.load %arg17[%c0_56, %c0_57] : memref<1x128xf32, #tpu.memory_space<vmem>>, vector<1x128xf32>
    %112 = vector.broadcast %111 : vector<1x128xf32> to vector<32x128xf32>
    %113 = arith.addf %110, %112 : vector<32x128xf32>
    %114 = arith.truncf %113 : vector<32x128xf32> to vector<32x128xbf16>
    %c0_58 = arith.constant 0 : index
    %c0_59 = arith.constant 0 : index
    %115 = vector.load %arg18[%c0_58, %c0_59] : memref<32x128xbf16, #tpu.memory_space<vmem>>, vector<32x128xbf16>
    tpu.vector_store %arg18[%c0_58, %c0_59], %114 {strides = array<i32>} : memref<32x128xbf16, #tpu.memory_space<vmem>>, vector<32x128xbf16>,
    return
  }
  func.func @transform_0(%arg0: i32) -> (i32, i32) {
    %c0_i32 = arith.constant 0 : i32
    %c0_i32_0 = arith.constant 0 : i32
    return %arg0, %c0_i32 : i32, i32
  }
  func.func @transform_1(%arg0: i32) -> (i32, i32) {
    %c0_i32 = arith.constant 0 : i32
    %c0_i32_0 = arith.constant 0 : i32
    %c0_i32_1 = arith.constant 0 : i32
    return %c0_i32, %c0_i32_0 : i32, i32
  }
  func.func @transform_2(%arg0: i32) -> (i32, i32) {
    %c0_i32 = arith.constant 0 : i32
    %c0_i32_0 = arith.constant 0 : i32
    %c0_i32_1 = arith.constant 0 : i32
    return %c0_i32, %c0_i32_0 : i32, i32
  }
  func.func @transform_3(%arg0: i32) -> (i32, i32) {
    %c0_i32 = arith.constant 0 : i32
    %c0_i32_0 = arith.constant 0 : i32
    %c0_i32_1 = arith.constant 0 : i32
    return %c0_i32, %c0_i32_0 : i32, i32
  }
  func.func @transform_4(%arg0: i32) -> (i32, i32) {
    %c0_i32 = arith.constant 0 : i32
    %c0_i32_0 = arith.constant 0 : i32
    %c0_i32_1 = arith.constant 0 : i32
    return %c0_i32, %c0_i32_0 : i32, i32
  }
  func.func @transform_5(%arg0: i32) -> (i32, i32) {
    %c0_i32 = arith.constant 0 : i32
    %c0_i32_0 = arith.constant 0 : i32
    %c0_i32_1 = arith.constant 0 : i32
    return %c0_i32, %c0_i32_0 : i32, i32
  }
  func.func @transform_6(%arg0: i32) -> (i32, i32) {
    %c0_i32 = arith.constant 0 : i32
    %c0_i32_0 = arith.constant 0 : i32
    %c0_i32_1 = arith.constant 0 : i32
    return %c0_i32, %c0_i32_0 : i32, i32
  }
  func.func @transform_7(%arg0: i32) -> (i32, i32) {
    %c0_i32 = arith.constant 0 : i32
    %c0_i32_0 = arith.constant 0 : i32
    %c0_i32_1 = arith.constant 0 : i32
    return %c0_i32, %c0_i32_0 : i32, i32
  }
  func.func @transform_8(%arg0: i32) -> (i32, i32) {
    %c0_i32 = arith.constant 0 : i32
    %c0_i32_0 = arith.constant 0 : i32
    %c0_i32_1 = arith.constant 0 : i32
    return %c0_i32, %c0_i32_0 : i32, i32
  }
  func.func @transform_9(%arg0: i32) -> (i32, i32) {
    %c0_i32 = arith.constant 0 : i32
    %c0_i32_0 = arith.constant 0 : i32
    %c0_i32_1 = arith.constant 0 : i32
    return %c0_i32, %c0_i32_0 : i32, i32
  }
  func.func @transform_10(%arg0: i32) -> (i32, i32) {
    %c0_i32 = arith.constant 0 : i32
    %c0_i32_0 = arith.constant 0 : i32
    %c0_i32_1 = arith.constant 0 : i32
    return %c0_i32, %c0_i32_0 : i32, i32
  }
  func.func @transform_11(%arg0: i32) -> (i32, i32) {
    %c0_i32 = arith.constant 0 : i32
    %c0_i32_0 = arith.constant 0 : i32
    %c0_i32_1 = arith.constant 0 : i32
    return %c0_i32, %c0_i32_0 : i32, i32
  }
  func.func @transform_12(%arg0: i32) -> (i32, i32) {
    %c0_i32 = arith.constant 0 : i32
    %c0_i32_0 = arith.constant 0 : i32
    %c0_i32_1 = arith.constant 0 : i32
    return %c0_i32, %c0_i32_0 : i32, i32
  }
  func.func @transform_13(%arg0: i32) -> (i32, i32) {
    %c0_i32 = arith.constant 0 : i32
    %c0_i32_0 = arith.constant 0 : i32
    %c0_i32_1 = arith.constant 0 : i32
    return %c0_i32, %c0_i32_0 : i32, i32
  }
  func.func @transform_14(%arg0: i32) -> (i32, i32) {
    %c0_i32 = arith.constant 0 : i32
    %c0_i32_0 = arith.constant 0 : i32
    %c0_i32_1 = arith.constant 0 : i32
    return %c0_i32, %c0_i32_0 : i32, i32
  }
  func.func @transform_15(%arg0: i32) -> (i32, i32) {
    %c0_i32 = arith.constant 0 : i32
    %c0_i32_0 = arith.constant 0 : i32
    %c0_i32_1 = arith.constant 0 : i32
    return %c0_i32, %c0_i32_0 : i32, i32
  }
  func.func @transform_16(%arg0: i32) -> (i32, i32) {
    %c0_i32 = arith.constant 0 : i32
    %c0_i32_0 = arith.constant 0 : i32
    %c0_i32_1 = arith.constant 0 : i32
    return %c0_i32, %c0_i32_0 : i32, i32
  }
  func.func @transform_17(%arg0: i32) -> (i32, i32) {
    %c0_i32 = arith.constant 0 : i32
    %c0_i32_0 = arith.constant 0 : i32
    return %arg0, %c0_i32 : i32, i32
  }
}

</mosaic_0001>

<llo_original>
// kernel: mlp_forward.1
$region0: #{mlp_forward.1}
  #allocation0 [shape = 'u32[]', space=smem, size = 0x4, offset = 0x4, fixed_abs, tag = 'smem constant byte address 0x4 - core index']
  #allocation1 [shape = 'u32[144,128]{1,0:T(1,128)}', space=vmem, size = 0x12000, scoped, tag = 'internal scratch']
  %s0 = inlined_call_operand.vmem [shape: bf16[48,20], index: 0, kind: input, shape index: {}]
  %s1 = inlined_call_operand.hbm [shape: bf16[20,32], index: 1, kind: input, shape index: {}]
  %s2 = inlined_call_operand.vmem [shape: f32[1,32], index: 2, kind: input, shape index: {}]
  %s3 = inlined_call_operand.vmem [shape: bf16[32,64], index: 3, kind: input, shape index: {}]
  %s4 = inlined_call_operand.vmem [shape: f32[1,64], index: 4, kind: input, shape index: {}]
  %s5 = inlined_call_operand.vmem [shape: bf16[64,128], index: 5, kind: input, shape index: {}]
  %s6 = inlined_call_operand.vmem [shape: f32[1,128], index: 6, kind: input, shape index: {}]
  %s7 = inlined_call_operand.vmem [shape: bf16[128,256], index: 7, kind: input, shape index: {}]
  %s8 = inlined_call_operand.vmem [shape: f32[1,256], index: 8, kind: input, shape index: {}]
  %s9 = inlined_call_operand.hbm [shape: bf16[256,128], index: 9, kind: input, shape index: {}]
  %s10 = inlined_call_operand.vmem [shape: f32[1,128], index: 10, kind: input, shape index: {}]
  %s11 = inlined_call_operand.vmem [shape: bf16[128,64], index: 11, kind: input, shape index: {}]
  %s12 = inlined_call_operand.vmem [shape: f32[1,64], index: 12, kind: input, shape index: {}]
  %s13 = inlined_call_operand.vmem [shape: bf16[64,32], index: 13, kind: input, shape index: {}]
  %s14 = inlined_call_operand.vmem [shape: f32[1,32], index: 14, kind: input, shape index: {}]
  %s15 = inlined_call_operand.vmem [shape: bf16[32,128], index: 15, kind: input, shape index: {}]
  %s16 = inlined_call_operand.vmem [shape: f32[1,128], index: 16, kind: input, shape index: {}]
  %s17 = inlined_call_operand.vmem [shape: bf16[48,128], index: 17, kind: output, shape index: {}]
  %s18 = sld [smem:[#allocation0]]
  $region153: #{mlp_forward.1} parent=0
    _
  %s20 = ssub.s32 1, %s18
  %s21 = scalar_select 0, %s20, %s18
  $region1: #{mlp_forward.1} parent=0
    #allocation2 [shape = 'u8[6144]{0}', space=vmem, size = 0x1800, scoped, tag = 'input window, operand 1, single buffered']
    #allocation3 [shape = 's32[2]{0}', space=sflag, size = 0x8, scoped, tag = 'scoped memory for mlp_forward.1']
    #allocation4 [shape = 'u8[65536]{0}', space=vmem, size = 0x10000, scoped, tag = 'input window, operand 9, single buffered']
    #allocation5 [shape = 's32[1]{0}', space=sflag, size = 0x4, scoped, tag = 'scoped memory for mlp_forward.1']
    #allocation6 [shape = 'u8[16384]{0}', space=vmem, size = 0x4000, scoped, tag = 'output window, operand 0']
    %22 = vsyncpa [#allocation3], 0
    %23 = vsyncpa [#allocation5], 0
    loop: start=0, step=1, limit=4
    $region2: #{mlp_forward.1} parent=1 // loop_pre_header
      _
    $region3: #{mlp_forward.1} parent=1 // loop_header
      %s25 = sphi 0, %s29
      %p26 = scmp.ge.s32.totalorder %s25, 4
      %s35 = sphi 0, %s37
      %s38 = sphi 0, %s35
      %s39 = sphi 0, %s38
      %s55 = sphi 0, %s39
      %s59 = sphi 0, %s59
      %s61 = sphi 0, %s59
      %s62 = sphi 0, %s61
      %s76 = sphi 0, %s62
      %s80 = sphi 0, %s80
      %s82 = sphi 0, %s80
      %s83 = sphi 0, %s82
      %s97 = sphi 0, %s83
      %s101 = sphi 0, %s101
      %s103 = sphi 0, %s101
      %s104 = sphi 0, %s103
      %s118 = sphi 0, %s104
      %s122 = sphi 0, %s122
      %s124 = sphi 0, %s122
      %s125 = sphi 0, %s124
      %s139 = sphi 0, %s125
      %s143 = sphi 0, %s143
      %s145 = sphi 0, %s143
      %s146 = sphi 0, %s145
      %s160 = sphi 0, %s146
      %s164 = sphi 0, %s164
      %s166 = sphi 0, %s164
      %s167 = sphi 0, %s166
      %s181 = sphi 0, %s167
      %s185 = sphi 0, %s185
      %s187 = sphi 0, %s185
      %s188 = sphi 0, %s187
      %s202 = sphi 0, %s188
      %s206 = sphi 0, %s206
      %s208 = sphi 0, %s206
      %s209 = sphi 0, %s208
      %s223 = sphi 0, %s209
      %s227 = sphi 0, %s227
      %s229 = sphi 0, %s227
      %s230 = sphi 0, %s229
      %s244 = sphi 0, %s230
      %s248 = sphi 0, %s248
      %s250 = sphi 0, %s248
      %s251 = sphi 0, %s250
      %s265 = sphi 0, %s251
      %s269 = sphi 0, %s269
      %s271 = sphi 0, %s269
      %s272 = sphi 0, %s271
      %s286 = sphi 0, %s272
      %s290 = sphi 0, %s290
      %s292 = sphi 0, %s290
      %s293 = sphi 0, %s292
      %s307 = sphi 0, %s293
      %s311 = sphi 0, %s311
      %s313 = sphi 0, %s311
      %s314 = sphi 0, %s313
      %s328 = sphi 0, %s314
      %s332 = sphi 0, %s332
      %s334 = sphi 0, %s332
      %s335 = sphi 0, %s334
      %s349 = sphi 0, %s335
      %s353 = sphi 0, %s353
      %s355 = sphi 0, %s353
      %s356 = sphi 0, %s355
      %s370 = sphi 0, %s356
      %s374 = sphi 0, %s374
      %s376 = sphi 0, %s374
      %s377 = sphi 0, %s376
      %s391 = sphi 0, %s377
      %s397 = sphi 0, %s399
      %s400 = sphi 0, %s397
      %s401 = sphi 0, %s400
      %s417 = sphi 0, %s401
    $region4: #{mlp_forward.1} parent=1 // loop_header_branch
      %28 = sbr.rel (%p26) target = $region8
    $region5: #{mlp_forward.1} parent=1 // loop_body
      %s30 = ssub.s32 %s25, 1
      %s31 = ssub.s32 %s25, 2
      %s32 = sadd.s32 %s25, 1
      %s33 = ssub.s32 %s25, %s32
      %p34 = scmp.eq.s32.totalorder %s33, 0
      %s36 = sadd.s32 %s35, 1
      %s37 = scalar_select %p34, %s35, %s36
      %p40 = pneg %p34
      %p41 = scmp.eq.s32.totalorder %s25, 1
      %p42 = por %p40, %p41
      %p43 = scmp.ne.s32.totalorder %s35, %s38
      %p44 = scmp.eq.s32.totalorder %s25, 0
      %p45 = por %p43, %p44
      %p46 = scmp.ne.s32.totalorder %s35, %s38
      %p47 = scmp.eq.s32.totalorder %s30, 1
      %p48 = por %p46, %p47
      %p49 = scmp.ne.s32.totalorder %s38, %s39
      %p50 = scmp.eq.s32.totalorder %s30, 0
      %p51 = por %p49, %p50
      %p52 = scmp.ne.s32.totalorder %s38, %s39
      %p53 = scmp.eq.s32.totalorder %s31, 1
      %p54 = por %p52, %p53
      %p56 = scmp.ne.s32.totalorder %s39, %s55
      %p57 = scmp.eq.s32.totalorder %s31, 0
      %p58 = por %p56, %p57
      %s60 = sadd.s32 %s59, 1
      %p63 = scmp.eq.s32.totalorder %s25, 1
      %p64 = scmp.ne.s32.totalorder %s59, %s61
      %p65 = scmp.eq.s32.totalorder %s25, 0
      %p66 = por %p64, %p65
      %p67 = scmp.ne.s32.totalorder %s59, %s61
      %p68 = scmp.eq.s32.totalorder %s30, 1
      %p69 = por %p67, %p68
      %p70 = scmp.ne.s32.totalorder %s61, %s62
      %p71 = scmp.eq.s32.totalorder %s30, 0
      %p72 = por %p70, %p71
      %p73 = scmp.ne.s32.totalorder %s61, %s62
      %p74 = scmp.eq.s32.totalorder %s31, 1
      %p75 = por %p73, %p74
      %p77 = scmp.ne.s32.totalorder %s62, %s76
      %p78 = scmp.eq.s32.totalorder %s31, 0
      %p79 = por %p77, %p78
      %s81 = sadd.s32 %s80, 1
      %p84 = scmp.eq.s32.totalorder %s25, 1
      %p85 = scmp.ne.s32.totalorder %s80, %s82
      %p86 = scmp.eq.s32.totalorder %s25, 0
      %p87 = por %p85, %p86
      %p88 = scmp.ne.s32.totalorder %s80, %s82
      %p89 = scmp.eq.s32.totalorder %s30, 1
      %p90 = por %p88, %p89
      %p91 = scmp.ne.s32.totalorder %s82, %s83
      %p92 = scmp.eq.s32.totalorder %s30, 0
      %p93 = por %p91, %p92
      %p94 = scmp.ne.s32.totalorder %s82, %s83
      %p95 = scmp.eq.s32.totalorder %s31, 1
      %p96 = por %p94, %p95
      %p98 = scmp.ne.s32.totalorder %s83, %s97
      %p99 = scmp.eq.s32.totalorder %s31, 0
      %p100 = por %p98, %p99
      %s102 = sadd.s32 %s101, 1
      %p105 = scmp.eq.s32.totalorder %s25, 1
      %p106 = scmp.ne.s32.totalorder %s101, %s103
      %p107 = scmp.eq.s32.totalorder %s25, 0
      %p108 = por %p106, %p107
      %p109 = scmp.ne.s32.totalorder %s101, %s103
      %p110 = scmp.eq.s32.totalorder %s30, 1
      %p111 = por %p109, %p110
      %p112 = scmp.ne.s32.totalorder %s103, %s104
      %p113 = scmp.eq.s32.totalorder %s30, 0
      %p114 = por %p112, %p113
      %p115 = scmp.ne.s32.totalorder %s103, %s104
      %p116 = scmp.eq.s32.totalorder %s31, 1
      %p117 = por %p115, %p116
      %p119 = scmp.ne.s32.totalorder %s104, %s118
      %p120 = scmp.eq.s32.totalorder %s31, 0
      %p121 = por %p119, %p120
      %s123 = sadd.s32 %s122, 1
      %p126 = scmp.eq.s32.totalorder %s25, 1
      %p127 = scmp.ne.s32.totalorder %s122, %s124
      %p128 = scmp.eq.s32.totalorder %s25, 0
      %p129 = por %p127, %p128
      %p130 = scmp.ne.s32.totalorder %s122, %s124
      %p131 = scmp.eq.s32.totalorder %s30, 1
      %p132 = por %p130, %p131
      %p133 = scmp.ne.s32.totalorder %s124, %s125
      %p134 = scmp.eq.s32.totalorder %s30, 0
      %p135 = por %p133, %p134
      %p136 = scmp.ne.s32.totalorder %s124, %s125
      %p137 = scmp.eq.s32.totalorder %s31, 1
      %p138 = por %p136, %p137
      %p140 = scmp.ne.s32.totalorder %s125, %s139
      %p141 = scmp.eq.s32.totalorder %s31, 0
      %p142 = por %p140, %p141
      %s144 = sadd.s32 %s143, 1
      %p147 = scmp.eq.s32.totalorder %s25, 1
      %p148 = scmp.ne.s32.totalorder %s143, %s145
      %p149 = scmp.eq.s32.totalorder %s25, 0
      %p150 = por %p148, %p149
      %p151 = scmp.ne.s32.totalorder %s143, %s145
      %p152 = scmp.eq.s32.totalorder %s30, 1
      %p153 = por %p151, %p152
      %p154 = scmp.ne.s32.totalorder %s145, %s146
      %p155 = scmp.eq.s32.totalorder %s30, 0
      %p156 = por %p154, %p155
      %p157 = scmp.ne.s32.totalorder %s145, %s146
      %p158 = scmp.eq.s32.totalorder %s31, 1
      %p159 = por %p157, %p158
      %p161 = scmp.ne.s32.totalorder %s146, %s160
      %p162 = scmp.eq.s32.totalorder %s31, 0
      %p163 = por %p161, %p162
      %s165 = sadd.s32 %s164, 1
      %p168 = scmp.eq.s32.totalorder %s25, 1
      %p169 = scmp.ne.s32.totalorder %s164, %s166
      %p170 = scmp.eq.s32.totalorder %s25, 0
      %p171 = por %p169, %p170
      %p172 = scmp.ne.s32.totalorder %s164, %s166
      %p173 = scmp.eq.s32.totalorder %s30, 1
      %p174 = por %p172, %p173
      %p175 = scmp.ne.s32.totalorder %s166, %s167
      %p176 = scmp.eq.s32.totalorder %s30, 0
      %p177 = por %p175, %p176
      %p178 = scmp.ne.s32.totalorder %s166, %s167
      %p179 = scmp.eq.s32.totalorder %s31, 1
      %p180 = por %p178, %p179
      %p182 = scmp.ne.s32.totalorder %s167, %s181
      %p183 = scmp.eq.s32.totalorder %s31, 0
      %p184 = por %p182, %p183
      %s186 = sadd.s32 %s185, 1
      %p189 = scmp.eq.s32.totalorder %s25, 1
      %p190 = scmp.ne.s32.totalorder %s185, %s187
      %p191 = scmp.eq.s32.totalorder %s25, 0
      %p192 = por %p190, %p191
      %p193 = scmp.ne.s32.totalorder %s185, %s187
      %p194 = scmp.eq.s32.totalorder %s30, 1
      %p195 = por %p193, %p194
      %p196 = scmp.ne.s32.totalorder %s187, %s188
      %p197 = scmp.eq.s32.totalorder %s30, 0
      %p198 = por %p196, %p197
      %p199 = scmp.ne.s32.totalorder %s187, %s188
      %p200 = scmp.eq.s32.totalorder %s31, 1
      %p201 = por %p199, %p200
      %p203 = scmp.ne.s32.totalorder %s188, %s202
      %p204 = scmp.eq.s32.totalorder %s31, 0
      %p205 = por %p203, %p204
      %s207 = sadd.s32 %s206, 1
      %p210 = scmp.eq.s32.totalorder %s25, 1
      %p211 = scmp.ne.s32.totalorder %s206, %s208
      %p212 = scmp.eq.s32.totalorder %s25, 0
      %p213 = por %p211, %p212
      %p214 = scmp.ne.s32.totalorder %s206, %s208
      %p215 = scmp.eq.s32.totalorder %s30, 1
      %p216 = por %p214, %p215
      %p217 = scmp.ne.s32.totalorder %s208, %s209
      %p218 = scmp.eq.s32.totalorder %s30, 0
      %p219 = por %p217, %p218
      %p220 = scmp.ne.s32.totalorder %s208, %s209
      %p221 = scmp.eq.s32.totalorder %s31, 1
      %p222 = por %p220, %p221
      %p224 = scmp.ne.s32.totalorder %s209, %s223
      %p225 = scmp.eq.s32.totalorder %s31, 0
      %p226 = por %p224, %p225
      %s228 = sadd.s32 %s227, 1
      %p231 = scmp.eq.s32.totalorder %s25, 1
      %p232 = scmp.ne.s32.totalorder %s227, %s229
      %p233 = scmp.eq.s32.totalorder %s25, 0
      %p234 = por %p232, %p233
      %p235 = scmp.ne.s32.totalorder %s227, %s229
      %p236 = scmp.eq.s32.totalorder %s30, 1
      %p237 = por %p235, %p236
      %p238 = scmp.ne.s32.totalorder %s229, %s230
      %p239 = scmp.eq.s32.totalorder %s30, 0
      %p240 = por %p238, %p239
      %p241 = scmp.ne.s32.totalorder %s229, %s230
      %p242 = scmp.eq.s32.totalorder %s31, 1
      %p243 = por %p241, %p242
      %p245 = scmp.ne.s32.totalorder %s230, %s244
      %p246 = scmp.eq.s32.totalorder %s31, 0
      %p247 = por %p245, %p246
      %s249 = sadd.s32 %s248, 1
      %p252 = scmp.eq.s32.totalorder %s25, 1
      %p253 = scmp.ne.s32.totalorder %s248, %s250
      %p254 = scmp.eq.s32.totalorder %s25, 0
      %p255 = por %p253, %p254
      %p256 = scmp.ne.s32.totalorder %s248, %s250
      %p257 = scmp.eq.s32.totalorder %s30, 1
      %p258 = por %p256, %p257
      %p259 = scmp.ne.s32.totalorder %s250, %s251
      %p260 = scmp.eq.s32.totalorder %s30, 0
      %p261 = por %p259, %p260
      %p262 = scmp.ne.s32.totalorder %s250, %s251
      %p263 = scmp.eq.s32.totalorder %s31, 1
      %p264 = por %p262, %p263
      %p266 = scmp.ne.s32.totalorder %s251, %s265
      %p267 = scmp.eq.s32.totalorder %s31, 0
      %p268 = por %p266, %p267
      %s270 = sadd.s32 %s269, 1
      %p273 = scmp.eq.s32.totalorder %s25, 1
      %p274 = scmp.ne.s32.totalorder %s269, %s271
      %p275 = scmp.eq.s32.totalorder %s25, 0
      %p276 = por %p274, %p275
      %p277 = scmp.ne.s32.totalorder %s269, %s271
      %p278 = scmp.eq.s32.totalorder %s30, 1
      %p279 = por %p277, %p278
      %p280 = scmp.ne.s32.totalorder %s271, %s272
      %p281 = scmp.eq.s32.totalorder %s30, 0
      %p282 = por %p280, %p281
      %p283 = scmp.ne.s32.totalorder %s271, %s272
      %p284 = scmp.eq.s32.totalorder %s31, 1
      %p285 = por %p283, %p284
      %p287 = scmp.ne.s32.totalorder %s272, %s286
      %p288 = scmp.eq.s32.totalorder %s31, 0
      %p289 = por %p287, %p288
      %s291 = sadd.s32 %s290, 1
      %p294 = scmp.eq.s32.totalorder %s25, 1
      %p295 = scmp.ne.s32.totalorder %s290, %s292
      %p296 = scmp.eq.s32.totalorder %s25, 0
      %p297 = por %p295, %p296
      %p298 = scmp.ne.s32.totalorder %s290, %s292
      %p299 = scmp.eq.s32.totalorder %s30, 1
      %p300 = por %p298, %p299
      %p301 = scmp.ne.s32.totalorder %s292, %s293
      %p302 = scmp.eq.s32.totalorder %s30, 0
      %p303 = por %p301, %p302
      %p304 = scmp.ne.s32.totalorder %s292, %s293
      %p305 = scmp.eq.s32.totalorder %s31, 1
      %p306 = por %p304, %p305
      %p308 = scmp.ne.s32.totalorder %s293, %s307
      %p309 = scmp.eq.s32.totalorder %s31, 0
      %p310 = por %p308, %p309
      %s312 = sadd.s32 %s311, 1
      %p315 = scmp.eq.s32.totalorder %s25, 1
      %p316 = scmp.ne.s32.totalorder %s311, %s313
      %p317 = scmp.eq.s32.totalorder %s25, 0
      %p318 = por %p316, %p317
      %p319 = scmp.ne.s32.totalorder %s311, %s313
      %p320 = scmp.eq.s32.totalorder %s30, 1
      %p321 = por %p319, %p320
      %p322 = scmp.ne.s32.totalorder %s313, %s314
      %p323 = scmp.eq.s32.totalorder %s30, 0
      %p324 = por %p322, %p323
      %p325 = scmp.ne.s32.totalorder %s313, %s314
      %p326 = scmp.eq.s32.totalorder %s31, 1
      %p327 = por %p325, %p326
      %p329 = scmp.ne.s32.totalorder %s314, %s328
      %p330 = scmp.eq.s32.totalorder %s31, 0
      %p331 = por %p329, %p330
      %s333 = sadd.s32 %s332, 1
      %p336 = scmp.eq.s32.totalorder %s25, 1
      %p337 = scmp.ne.s32.totalorder %s332, %s334
      %p338 = scmp.eq.s32.totalorder %s25, 0
      %p339 = por %p337, %p338
      %p340 = scmp.ne.s32.totalorder %s332, %s334
      %p341 = scmp.eq.s32.totalorder %s30, 1
      %p342 = por %p340, %p341
      %p343 = scmp.ne.s32.totalorder %s334, %s335
      %p344 = scmp.eq.s32.totalorder %s30, 0
      %p345 = por %p343, %p344
      %p346 = scmp.ne.s32.totalorder %s334, %s335
      %p347 = scmp.eq.s32.totalorder %s31, 1
      %p348 = por %p346, %p347
      %p350 = scmp.ne.s32.totalorder %s335, %s349
      %p351 = scmp.eq.s32.totalorder %s31, 0
      %p352 = por %p350, %p351
      %s354 = sadd.s32 %s353, 1
      %p357 = scmp.eq.s32.totalorder %s25, 1
      %p358 = scmp.ne.s32.totalorder %s353, %s355
      %p359 = scmp.eq.s32.totalorder %s25, 0
      %p360 = por %p358, %p359
      %p361 = scmp.ne.s32.totalorder %s353, %s355
      %p362 = scmp.eq.s32.totalorder %s30, 1
      %p363 = por %p361, %p362
      %p364 = scmp.ne.s32.totalorder %s355, %s356
      %p365 = scmp.eq.s32.totalorder %s30, 0
      %p366 = por %p364, %p365
      %p367 = scmp.ne.s32.totalorder %s355, %s356
      %p368 = scmp.eq.s32.totalorder %s31, 1
      %p369 = por %p367, %p368
      %p371 = scmp.ne.s32.totalorder %s356, %s370
      %p372 = scmp.eq.s32.totalorder %s31, 0
      %p373 = por %p371, %p372
      %s375 = sadd.s32 %s374, 1
      %p378 = scmp.eq.s32.totalorder %s25, 1
      %p379 = scmp.ne.s32.totalorder %s374, %s376
      %p380 = scmp.eq.s32.totalorder %s25, 0
      %p381 = por %p379, %p380
      %p382 = scmp.ne.s32.totalorder %s374, %s376
      %p383 = scmp.eq.s32.totalorder %s30, 1
      %p384 = por %p382, %p383
      %p385 = scmp.ne.s32.totalorder %s376, %s377
      %p386 = scmp.eq.s32.totalorder %s30, 0
      %p387 = por %p385, %p386
      %p388 = scmp.ne.s32.totalorder %s376, %s377
      %p389 = scmp.eq.s32.totalorder %s31, 1
      %p390 = por %p388, %p389
      %p392 = scmp.ne.s32.totalorder %s377, %s391
      %p393 = scmp.eq.s32.totalorder %s31, 0
      %p394 = por %p392, %p393
      %s395 = ssub.s32 %s25, %s32
      %p396 = scmp.eq.s32.totalorder %s395, 0
      %s398 = sadd.s32 %s397, 1
      %s399 = scalar_select %p396, %s397, %s398
      %p402 = pneg %p396
      %p403 = scmp.eq.s32.totalorder %s25, 1
      %p404 = por %p402, %p403
      %p405 = scmp.ne.s32.totalorder %s397, %s400
      %p406 = scmp.eq.s32.totalorder %s25, 0
      %p407 = por %p405, %p406
      %p408 = scmp.ne.s32.totalorder %s397, %s400
      %p409 = scmp.eq.s32.totalorder %s30, 1
      %p410 = por %p408, %p409
      %p411 = scmp.ne.s32.totalorder %s400, %s401
      %p412 = scmp.eq.s32.totalorder %s30, 0
      %p413 = por %p411, %p412
      %p414 = scmp.ne.s32.totalorder %s400, %s401
      %p415 = scmp.eq.s32.totalorder %s31, 1
      %p416 = por %p414, %p415
      %p418 = scmp.ne.s32.totalorder %s401, %s417
      %p419 = scmp.eq.s32.totalorder %s31, 0
      %p420 = por %p418, %p419
      %p421 = scmp.le.s32.totalorder 1, %s25
      %p422 = scmp.lt.s32.totalorder %s25, 3
      %p423 = pnand %p421, %p422
      %p424 = pneg %p423
      // Predicated region
      $region9: #{mlp_forward.1} parent=5 // pred_check
        _
      $region10: #{mlp_forward.1} parent=5 // pred_check_branch
        %426 = sbr.rel (%p423) target = $region12
      $region11: #{mlp_forward.1} parent=5 // pred_region
        %s427 = ssub.s32 %s25, 1
        // Predicated region
        $region13: #{mlp_forward.1} parent=11 // pred_check
          %p428 = pneg %p72
        $region14: #{mlp_forward.1} parent=11 // pred_check_branch
          %430 = sbr.rel (%p428) target = $region16
        $region15: #{mlp_forward.1} parent=11 // pred_region
          %s432 = ssub.s32 192, 192
          %433 = vsyncadd [#allocation3], %s432
          %s434 = sshll.u32 [#allocation2], 4
          %s435 = int_to_ptr.vmem [resolvable:$true] %s434
          %440 = dma.hbm_to_vmem [thread:$0]  %s1, 192, %s435, [#allocation3], 64, 64, 4
        $region16: #{mlp_forward.1} parent=11 // pred_fallthru
          _
        // Predicated region
        $region17: #{mlp_forward.1} parent=11 // pred_check
          %p441 = pneg %p93
        $region18: #{mlp_forward.1} parent=11 // pred_check_branch
          %443 = sbr.rel (%p441) target = $region20
        $region19: #{mlp_forward.1} parent=11 // pred_region
          _
        $region20: #{mlp_forward.1} parent=11 // pred_fallthru
          _
        // Predicated region
        $region21: #{mlp_forward.1} parent=11 // pred_check
          %p444 = pneg %p114
        $region22: #{mlp_forward.1} parent=11 // pred_check_branch
          %446 = sbr.rel (%p444) target = $region24
        $region23: #{mlp_forward.1} parent=11 // pred_region
          _
        $region24: #{mlp_forward.1} parent=11 // pred_fallthru
          _
        // Predicated region
        $region25: #{mlp_forward.1} parent=11 // pred_check
          %p447 = pneg %p135
        $region26: #{mlp_forward.1} parent=11 // pred_check_branch
          %449 = sbr.rel (%p447) target = $region28
        $region27: #{mlp_forward.1} parent=11 // pred_region
          _
        $region28: #{mlp_forward.1} parent=11 // pred_fallthru
          _
        // Predicated region
        $region29: #{mlp_forward.1} parent=11 // pred_check
          %p450 = pneg %p156
        $region30: #{mlp_forward.1} parent=11 // pred_check_branch
          %452 = sbr.rel (%p450) target = $region32
        $region31: #{mlp_forward.1} parent=11 // pred_region
          _
        $region32: #{mlp_forward.1} parent=11 // pred_fallthru
          _
        // Predicated region
        $region33: #{mlp_forward.1} parent=11 // pred_check
          %p453 = pneg %p177
        $region34: #{mlp_forward.1} parent=11 // pred_check_branch
          %455 = sbr.rel (%p453) target = $region36
        $region35: #{mlp_forward.1} parent=11 // pred_region
          _
        $region36: #{mlp_forward.1} parent=11 // pred_fallthru
          _
        // Predicated region
        $region37: #{mlp_forward.1} parent=11 // pred_check
          %p456 = pneg %p198
        $region38: #{mlp_forward.1} parent=11 // pred_check_branch
          %458 = sbr.rel (%p456) target = $region40
        $region39: #{mlp_forward.1} parent=11 // pred_region
          _
        $region40: #{mlp_forward.1} parent=11 // pred_fallthru
          _
        // Predicated region
        $region41: #{mlp_forward.1} parent=11 // pred_check
          %p459 = pneg %p219
        $region42: #{mlp_forward.1} parent=11 // pred_check_branch
          %461 = sbr.rel (%p459) target = $region44
        $region43: #{mlp_forward.1} parent=11 // pred_region
          _
        $region44: #{mlp_forward.1} parent=11 // pred_fallthru
          _
        // Predicated region
        $region45: #{mlp_forward.1} parent=11 // pred_check
          %p462 = pneg %p240
        $region46: #{mlp_forward.1} parent=11 // pred_check_branch
          %464 = sbr.rel (%p462) target = $region48
        $region47: #{mlp_forward.1} parent=11 // pred_region
          %s466 = ssub.s32 2048, 2048
          %467 = vsyncadd [#allocation5], %s466
          %s468 = sshll.u32 [#allocation4], 4
          %s469 = int_to_ptr.vmem [resolvable:$true] %s468
          %474 = dma.hbm_to_vmem [thread:$0]  %s9, 2048, %s469, [#allocation5], 64, 64, 4
        $region48: #{mlp_forward.1} parent=11 // pred_fallthru
          _
        // Predicated region
        $region49: #{mlp_forward.1} parent=11 // pred_check
          %p475 = pneg %p261
        $region50: #{mlp_forward.1} parent=11 // pred_check_branch
          %477 = sbr.rel (%p475) target = $region52
        $region51: #{mlp_forward.1} parent=11 // pred_region
          _
        $region52: #{mlp_forward.1} parent=11 // pred_fallthru
          _
        // Predicated region
        $region53: #{mlp_forward.1} parent=11 // pred_check
          %p478 = pneg %p282
        $region54: #{mlp_forward.1} parent=11 // pred_check_branch
          %480 = sbr.rel (%p478) target = $region56
        $region55: #{mlp_forward.1} parent=11 // pred_region
          _
        $region56: #{mlp_forward.1} parent=11 // pred_fallthru
          _
        // Predicated region
        $region57: #{mlp_forward.1} parent=11 // pred_check
          %p481 = pneg %p303
        $region58: #{mlp_forward.1} parent=11 // pred_check_branch
          %483 = sbr.rel (%p481) target = $region60
        $region59: #{mlp_forward.1} parent=11 // pred_region
          _
        $region60: #{mlp_forward.1} parent=11 // pred_fallthru
          _
        // Predicated region
        $region61: #{mlp_forward.1} parent=11 // pred_check
          %p484 = pneg %p324
        $region62: #{mlp_forward.1} parent=11 // pred_check_branch
          %486 = sbr.rel (%p484) target = $region64
        $region63: #{mlp_forward.1} parent=11 // pred_region
          _
        $region64: #{mlp_forward.1} parent=11 // pred_fallthru
          _
        // Predicated region
        $region65: #{mlp_forward.1} parent=11 // pred_check
          %p487 = pneg %p345
        $region66: #{mlp_forward.1} parent=11 // pred_check_branch
          %489 = sbr.rel (%p487) target = $region68
        $region67: #{mlp_forward.1} parent=11 // pred_region
          _
        $region68: #{mlp_forward.1} parent=11 // pred_fallthru
          _
        // Predicated region
        $region69: #{mlp_forward.1} parent=11 // pred_check
          %p490 = pneg %p366
        $region70: #{mlp_forward.1} parent=11 // pred_check_branch
          %492 = sbr.rel (%p490) target = $region72
        $region71: #{mlp_forward.1} parent=11 // pred_region
          _
        $region72: #{mlp_forward.1} parent=11 // pred_fallthru
          _
        // Predicated region
        $region73: #{mlp_forward.1} parent=11 // pred_check
          %p493 = pneg %p387
        $region74: #{mlp_forward.1} parent=11 // pred_check_branch
          %495 = sbr.rel (%p493) target = $region76
        $region75: #{mlp_forward.1} parent=11 // pred_region
          _
        $region76: #{mlp_forward.1} parent=11 // pred_fallthru
          _
      $region12: #{mlp_forward.1} parent=5 // pred_fallthru
        _
      %p496 = scmp.lt.s32.totalorder %s25, 2
      // Predicated region
      $region77: #{mlp_forward.1} parent=5 // pred_check
        %p497 = pneg %p496
      $region78: #{mlp_forward.1} parent=5 // pred_check_branch
        %499 = sbr.rel (%p497) target = $region80
      $region79: #{mlp_forward.1} parent=5 // pred_region
        // Predicated region
        $region81: #{mlp_forward.1} parent=79 // pred_check
          %p500 = pneg %p45
        $region82: #{mlp_forward.1} parent=79 // pred_check_branch
          %502 = sbr.rel (%p500) target = $region84
        $region83: #{mlp_forward.1} parent=79 // pred_region
          %s503 = smul.u32 4, %s25
          %s504 = ssub.s32 6, %s503
          %p505 = scmp.lt.s32.totalorder %s504, 4
          %s506 = scalar_select %p505, %s504, 4
          %s507 = smul.u32 64, %s506
          %p508 = scmp.lt.s32.totalorder %s503, 5
          %s509 = scalar_select %p508, %s503, 5
          %s510 = smul.addr %s509, 4
          %s511 = scalar_lea.vmem %s0, %s510
          %s512 = smul.u32 4, %s25
          %s513 = ssub.s32 6, %s512
          %p514 = scmp.lt.s32.totalorder %s513, 4
          %s515 = scalar_select %p514, %s513, 4
          %s516 = smul.u32 64, %s515
        $region84: #{mlp_forward.1} parent=79 // pred_fallthru
          _
      $region80: #{mlp_forward.1} parent=5 // pred_fallthru
        _
      %p517 = scmp.le.s32.totalorder 1, %s25
      %p518 = scmp.lt.s32.totalorder %s25, 3
      %p519 = pnand %p517, %p518
      %p520 = pneg %p519
      // Predicated region
      $region85: #{mlp_forward.1} parent=5 // pred_check
        _
      $region86: #{mlp_forward.1} parent=5 // pred_check_branch
        %522 = sbr.rel (%p519) target = $region88
      $region87: #{mlp_forward.1} parent=5 // pred_region
        %s523 = ssub.s32 %s25, 1
        // Predicated region
        $region89: #{mlp_forward.1} parent=87 // pred_check
          %p524 = pneg %p72
        $region90: #{mlp_forward.1} parent=87 // pred_check_branch
          %526 = sbr.rel (%p524) target = $region92
        $region91: #{mlp_forward.1} parent=87 // pred_region
          %527 = dma.done [#allocation3], 192
        $region92: #{mlp_forward.1} parent=87 // pred_fallthru
          _
        // Predicated region
        $region93: #{mlp_forward.1} parent=87 // pred_check
          %p528 = pneg %p240
        $region94: #{mlp_forward.1} parent=87 // pred_check_branch
          %530 = sbr.rel (%p528) target = $region96
        $region95: #{mlp_forward.1} parent=87 // pred_region
          %531 = dma.done [#allocation5], 2048
        $region96: #{mlp_forward.1} parent=87 // pred_fallthru
          _
        %s532 = smul.u32 4, %s30
        %s533 = ssub.s32 6, %s532
        %p534 = scmp.lt.s32.totalorder %s533, 4
        %s535 = scalar_select %p534, %s533, 4
        %s536 = smul.u32 64, %s535
        %p537 = scmp.lt.s32.totalorder %s532, 5
        %s538 = scalar_select %p537, %s532, 5
        %s539 = smul.addr %s538, 4
        %s540 = scalar_lea.vmem %s0, %s539
        %p541 = pneg %p51
        %p542 = pneg %p48
        %p543 = pneg %p72
        %p544 = pneg %p69
        %p545 = pneg %p93
        %p546 = pneg %p90
        %p547 = pneg %p114
        %p548 = pneg %p111
        %p549 = pneg %p135
        %p550 = pneg %p132
        %p551 = pneg %p156
        %p552 = pneg %p153
        %p553 = pneg %p177
        %p554 = pneg %p174
        %p555 = pneg %p198
        %p556 = pneg %p195
        %p557 = pneg %p219
        %p558 = pneg %p216
        %p559 = pneg %p240
        %p560 = pneg %p237
        %p561 = pneg %p261
        %p562 = pneg %p258
        %p563 = pneg %p282
        %p564 = pneg %p279
        %p565 = pneg %p303
        %p566 = pneg %p300
        %p567 = pneg %p324
        %p568 = pneg %p321
        %p569 = pneg %p345
        %p570 = pneg %p342
        %p571 = pneg %p366
        %p572 = pneg %p363
        %p573 = pneg %p387
        %p574 = pneg %p384
        %p575 = pneg %p413
        %p576 = pneg %p410
        %s577 = sand.u32 %s400, 1
        %s578 = sand.u32 %s400, 1
        %s579 = smul.addr %s578, 16
        %s580 = scalar_lea.vmem [#allocation6], %s579
        %s581 = smul.u32 4, %s30
        %s582 = ssub.s32 6, %s581
        %p583 = scmp.lt.s32.totalorder %s582, 4
        %s584 = scalar_select %p583, %s582, 4
        %s585 = smul.u32 64, %s584
        %p586 = scmp.lt.s32.totalorder %s581, 5
        %s587 = scalar_select %p586, %s581, 5
        %s588 = smul.addr %s587, 4
        %s589 = scalar_lea.vmem %s0, %s588
        %s590 = smul.u32 4, %s30
        %s591 = ssub.s32 6, %s590
        %p592 = scmp.lt.s32.totalorder %s591, 4
        %s593 = scalar_select %p592, %s591, 4
        %s594 = smul.u32 64, %s593
        %s595 = smul.u32 4, %s30
        %s596 = ssub.s32 6, %s595
        %p597 = scmp.lt.s32.totalorder %s596, 4
        %s598 = scalar_select %p597, %s596, 4
        %s599 = smul.u32 64, %s598
        %v604 = vld [vmem:[%s589] sm:$0xf]
        %v605 = vld [vmem:[%s589 + $0x4] sm:$0xf]
        %v606 = vld [vmem:[%s589 + $0x8] sm:$0xf]
        %v607 = vld [vmem:[%s589 + $0xc] sm:$0xf]
        %v608 = vld [vmem:[#allocation2] sm:$0xf]
        %v609 = vld [vmem:[#allocation2 + $0x4] sm:$0xf]
        %v610 = vld [vmem:[#allocation2 + $0x8] sm:$0x3]
        %v611 = vld [vmem:[%s2] sm:$0x1]
        %v613 = vlaneseq
        %v614 = vshrl.u32 %v613, 7
        %v615 = vsub.s32 0, %v614
        %v616 = vrot.slane %v611, %v615
        %v622 = vunpack.c.l.b16 %v604
        %v623 = vunpack.c.l.b16 %v605
        %v624 = vunpack.c.l.b16 %v606
        %v625 = vunpack.c.l.b16 %v607
        %v626 = vpack.c.b16 %v623, %v622
        %v627 = vpack.c.b16 %v625, %v624
        %v631 = vunpack.c.l.b16 %v608
        %v632 = vunpack.c.l.b16 %v609
        %v633 = vunpack.c.l.b16 %v610
        %v634 = vpack.c.b16 %v632, %v631
        %v635 = vpack.c.b16 %v633, %v633
        %vm637 = vcmask 162816
        %v639 = vsel %vm637, %v626, 0
        %v642 = vsel %vm637, %v627, 0
        %vm644 = vcmask 1041408
        %v646 = vsel %vm644, %v635, 0
        %648 = vmatprep.subr.bf16.mxu0 0
        %649 = vmatpush1.bf16.msra.mxu0 %v634
        %650 = vmatprep.subr.bf16.mxu0 0
        %651 = vmatpush1.bf16.msra.mxu0 %v646
        %652 = vmatprep.subr.bf16.mxu0 0
        %653 = vmatpush1.bf16.msra.mxu0 0
        %654 = vmatprep.subr.bf16.mxu0 0
        %655 = vmatpush1.bf16.msra.mxu0 0
        %656 = vmatprep.subr.bf16.mxu0 0
        %657 = vmatpush1.bf16.msra.mxu0 0
        %658 = vmatprep.subr.bf16.mxu0 0
        %659 = vmatpush1.bf16.msra.mxu0 0
        %660 = vmatprep.subr.bf16.mxu0 0
        %661 = vmatpush1.bf16.msra.mxu0 0
        %662 = vmatprep.subr.bf16.mxu0 0
        %663 = vmatpush1.bf16.msra.mxu0 0
        %664 = vmatprep.subr.bf16.mxu0 0
        %665 = vmatpush1.bf16.msra.mxu0 0
        %666 = vmatprep.subr.bf16.mxu0 0
        %667 = vmatpush1.bf16.msra.mxu0 0
        %668 = vmatprep.subr.bf16.mxu0 0
        %669 = vmatpush1.bf16.msra.mxu0 0
        %670 = vmatprep.subr.bf16.mxu0 0
        %671 = vmatpush1.bf16.msra.mxu0 0
        %672 = vmatprep.subr.bf16.mxu0 0
        %673 = vmatpush1.bf16.msra.mxu0 0
        %674 = vmatprep.subr.bf16.mxu0 0
        %675 = vmatpush1.bf16.msra.mxu0 0
        %676 = vmatprep.subr.bf16.mxu0 0
        %677 = vmatpush1.bf16.msra.mxu0 0
        %678 = vmatprep.subr.bf16.mxu0 0
        %679 = vmatpush1.bf16.msra.mxu0 0
        %680 = vmatprep.mubr.bf16.mxu0 0
        %681 = vmatmul.mubr.bf16.gmra.mrb[0].mxu0 %v639
        %v682 = vpop.f32.mrb[0].mxu0
        %v683 = vadd.f32 %v616, %v682
        %v684 = vpop.f32.mrb[0].mxu0
        %v685 = vpop.f32.mrb[0].mxu0
        %v686 = vadd.f32 %v616, %v685
        %v687 = vpop.f32.mrb[0].mxu0
        %688 = vmatprep.mubr.bf16.mxu0 0
        %689 = vmatmul.mubr.bf16.gmra.mrb[0].mxu0 %v642
        %v690 = vpop.f32.mrb[0].mxu0
        %v691 = vadd.f32 %v616, %v690
        %v692 = vpop.f32.mrb[0].mxu0
        %v693 = vpop.f32.mrb[0].mxu0
        %v694 = vadd.f32 %v616, %v693
        %v695 = vpop.f32.mrb[0].mxu0
        %696 = vdwg.mxu0
        %v697 = vpack.c.bf16 %v686, %v683
        %v698 = vpack.c.bf16 %v694, %v691
        %v699 = vld [vmem:[%s3] sm:$0xf]
        %v700 = vld [vmem:[%s3 + $0x4] sm:$0xf]
        %v701 = vld [vmem:[%s3 + $0x8] sm:$0xf]
        %v702 = vld [vmem:[%s3 + $0xc] sm:$0xf]
        %v703 = vld [vmem:[%s4] sm:$0x1]
        %v705 = vlaneseq
        %v706 = vshrl.u32 %v705, 7
        %v707 = vsub.s32 0, %v706
        %v708 = vrot.slane %v703, %v707
        %v714 = vunpack.c.l.b16 %v699
        %v715 = vunpack.c.l.b16 %v700
        %v716 = vunpack.c.l.b16 %v701
        %v717 = vunpack.c.l.b16 %v702
        %v718 = vpack.c.b16 %v715, %v714
        %v719 = vpack.c.b16 %v717, %v716
        %vm722 = vcmask 261120
        %v724 = vsel %vm722, %v697, 0
        %v727 = vsel %vm722, %v698, 0
        %729 = vmatprep.subr.bf16.mxu0 0
        %730 = vmatpush1.bf16.msra.mxu0 %v718
        %731 = vmatprep.subr.bf16.mxu0 0
        %732 = vmatpush1.bf16.msra.mxu0 %v719
        %733 = vmatprep.subr.bf16.mxu0 0
        %734 = vmatpush1.bf16.msra.mxu0 0
        %735 = vmatprep.subr.bf16.mxu0 0
        %736 = vmatpush1.bf16.msra.mxu0 0
        %737 = vmatprep.subr.bf16.mxu0 0
        %738 = vmatpush1.bf16.msra.mxu0 0
        %739 = vmatprep.subr.bf16.mxu0 0
        %740 = vmatpush1.bf16.msra.mxu0 0
        %741 = vmatprep.subr.bf16.mxu0 0
        %742 = vmatpush1.bf16.msra.mxu0 0
        %743 = vmatprep.subr.bf16.mxu0 0
        %744 = vmatpush1.bf16.msra.mxu0 0
        %745 = vmatprep.subr.bf16.mxu0 0
        %746 = vmatpush1.bf16.msra.mxu0 0
        %747 = vmatprep.subr.bf16.mxu0 0
        %748 = vmatpush1.bf16.msra.mxu0 0
        %749 = vmatprep.subr.bf16.mxu0 0
        %750 = vmatpush1.bf16.msra.mxu0 0
        %751 = vmatprep.subr.bf16.mxu0 0
        %752 = vmatpush1.bf16.msra.mxu0 0
        %753 = vmatprep.subr.bf16.mxu0 0
        %754 = vmatpush1.bf16.msra.mxu0 0
        %755 = vmatprep.subr.bf16.mxu0 0
        %756 = vmatpush1.bf16.msra.mxu0 0
        %757 = vmatprep.subr.bf16.mxu0 0
        %758 = vmatpush1.bf16.msra.mxu0 0
        %759 = vmatprep.subr.bf16.mxu0 0
        %760 = vmatpush1.bf16.msra.mxu0 0
        %761 = vmatprep.mubr.bf16.mxu0 0
        %762 = vmatmul.mubr.bf16.gmra.mrb[0].mxu0 %v724
        %v763 = vpop.f32.mrb[0].mxu0
        %v764 = vadd.f32 %v708, %v763
        %v765 = vpop.f32.mrb[0].mxu0
        %v766 = vpop.f32.mrb[0].mxu0
        %v767 = vadd.f32 %v708, %v766
        %v768 = vpop.f32.mrb[0].mxu0
        %769 = vmatprep.mubr.bf16.mxu0 0
        %770 = vmatmul.mubr.bf16.gmra.mrb[0].mxu0 %v727
        %v771 = vpop.f32.mrb[0].mxu0
        %v772 = vadd.f32 %v708, %v771
        %v773 = vpop.f32.mrb[0].mxu0
        %v774 = vpop.f32.mrb[0].mxu0
        %v775 = vadd.f32 %v708, %v774
        %v776 = vpop.f32.mrb[0].mxu0
        %777 = vdwg.mxu0
        %v778 = vpack.c.bf16 %v767, %v764
        %v779 = vpack.c.bf16 %v775, %v772
        %v780 = vmul.bf16 %v778, %v778
        %v781 = vmul.bf16 %v779, %v779
        %v782 = vmul.bf16 %v780, %v778
        %v783 = vmul.bf16 %v781, %v779
        %v784 = vmul.bf16 %v782, 1027030327
        %v785 = vmul.bf16 %v783, 1027030327
        %v786 = vadd.bf16 %v778, %v784
        %v787 = vadd.bf16 %v779, %v785
        %v788 = vmul.bf16 %v786, 1061961548
        %v789 = vmul.bf16 %v787, 1061961548
        %v790 = vtanh.bf16.pop %v788
        %v791 = vtanh.bf16.pop %v789
        %v792 = vadd.bf16 %v790, 1065369472
        %v793 = vadd.bf16 %v791, 1065369472
        %v794 = vmul.bf16 %v778, %v792
        %v795 = vmul.bf16 %v779, %v793
        %v796 = vld [vmem:[%s5] sm:$0xf]
        %v797 = vld [vmem:[%s5 + $0x4] sm:$0xf]
        %v798 = vld [vmem:[%s5 + $0x8] sm:$0xf]
        %v799 = vld [vmem:[%s5 + $0xc] sm:$0xf]
        %v800 = vld [vmem:[%s5 + $0x10] sm:$0xf]
        %v801 = vld [vmem:[%s5 + $0x14] sm:$0xf]
        %v802 = vld [vmem:[%s5 + $0x18] sm:$0xf]
        %v803 = vld [vmem:[%s5 + $0x1c] sm:$0xf]
        %v804 = vld [vmem:[%s6] sm:$0x1]
        %v806 = vlaneseq
        %v807 = vshrl.u32 %v806, 7
        %v808 = vsub.s32 0, %v807
        %v809 = vrot.slane %v804, %v808
        %v819 = vunpack.c.l.b16 %v796
        %v820 = vunpack.c.l.b16 %v797
        %v821 = vunpack.c.l.b16 %v798
        %v822 = vunpack.c.l.b16 %v799
        %v823 = vunpack.c.l.b16 %v800
        %v824 = vunpack.c.l.b16 %v801
        %v825 = vunpack.c.l.b16 %v802
        %v826 = vunpack.c.l.b16 %v803
        %v827 = vpack.c.b16 %v820, %v819
        %v828 = vpack.c.b16 %v822, %v821
        %v829 = vpack.c.b16 %v824, %v823
        %v830 = vpack.c.b16 %v826, %v825
        %vm835 = vcmask 523264
        %v837 = vsel %vm835, %v794, 0
        %v840 = vsel %vm835, %v795, 0
        %842 = vmatprep.subr.bf16.mxu0 0
        %843 = vmatpush1.bf16.msra.mxu0 %v827
        %844 = vmatprep.subr.bf16.mxu0 0
        %845 = vmatpush1.bf16.msra.mxu0 %v828
        %846 = vmatprep.subr.bf16.mxu0 0
        %847 = vmatpush1.bf16.msra.mxu0 %v829
        %848 = vmatprep.subr.bf16.mxu0 0
        %849 = vmatpush1.bf16.msra.mxu0 %v830
        %850 = vmatprep.subr.bf16.mxu0 0
        %851 = vmatpush1.bf16.msra.mxu0 0
        %852 = vmatprep.subr.bf16.mxu0 0
        %853 = vmatpush1.bf16.msra.mxu0 0
        %854 = vmatprep.subr.bf16.mxu0 0
        %855 = vmatpush1.bf16.msra.mxu0 0
        %856 = vmatprep.subr.bf16.mxu0 0
        %857 = vmatpush1.bf16.msra.mxu0 0
        %858 = vmatprep.subr.bf16.mxu0 0
        %859 = vmatpush1.bf16.msra.mxu0 0
        %860 = vmatprep.subr.bf16.mxu0 0
        %861 = vmatpush1.bf16.msra.mxu0 0
        %862 = vmatprep.subr.bf16.mxu0 0
        %863 = vmatpush1.bf16.msra.mxu0 0
        %864 = vmatprep.subr.bf16.mxu0 0
        %865 = vmatpush1.bf16.msra.mxu0 0
        %866 = vmatprep.subr.bf16.mxu0 0
        %867 = vmatpush1.bf16.msra.mxu0 0
        %868 = vmatprep.subr.bf16.mxu0 0
        %869 = vmatpush1.bf16.msra.mxu0 0
        %870 = vmatprep.subr.bf16.mxu0 0
        %871 = vmatpush1.bf16.msra.mxu0 0
        %872 = vmatprep.subr.bf16.mxu0 0
        %873 = vmatpush1.bf16.msra.mxu0 0
        %874 = vmatprep.mubr.bf16.mxu0 0
        %875 = vmatmul.mubr.bf16.gmra.mrb[0].mxu0 %v837
        %v876 = vpop.f32.mrb[0].mxu0
        %v877 = vadd.f32 %v809, %v876
        %v878 = vpop.f32.mrb[0].mxu0
        %v879 = vpop.f32.mrb[0].mxu0
        %v880 = vadd.f32 %v809, %v879
        %v881 = vpop.f32.mrb[0].mxu0
        %882 = vmatprep.mubr.bf16.mxu0 0
        %883 = vmatmul.mubr.bf16.gmra.mrb[0].mxu0 %v840
        %v884 = vpop.f32.mrb[0].mxu0
        %v885 = vadd.f32 %v809, %v884
        %v886 = vpop.f32.mrb[0].mxu0
        %v887 = vpop.f32.mrb[0].mxu0
        %v888 = vadd.f32 %v809, %v887
        %v889 = vpop.f32.mrb[0].mxu0
        %890 = vdwg.mxu0
        %v891 = vpack.c.bf16 %v880, %v877
        %v892 = vpack.c.bf16 %v888, %v885
        %v893 = vmul.bf16 %v891, %v891
        %v894 = vmul.bf16 %v892, %v892
        %v895 = vmul.bf16 %v893, %v891
        %v896 = vmul.bf16 %v894, %v892
        %v897 = vmul.bf16 %v895, 1027030327
        %v898 = vmul.bf16 %v896, 1027030327
        %v899 = vadd.bf16 %v891, %v897
        %v900 = vadd.bf16 %v892, %v898
        %v901 = vmul.bf16 %v899, 1061961548
        %v902 = vmul.bf16 %v900, 1061961548
        %v903 = vtanh.bf16.pop %v901
        %v904 = vtanh.bf16.pop %v902
        %v905 = vadd.bf16 %v903, 1065369472
        %v906 = vadd.bf16 %v904, 1065369472
        %v907 = vmul.bf16 %v891, %v905
        %v908 = vmul.bf16 %v892, %v906
        %v909 = vld [vmem:[%s7] sm:$0xff]
        %v910 = vld [vmem:[%s7 + $0x8] sm:$0xff]
        %v911 = vld [vmem:[%s7 + $0x10] sm:$0xff]
        %v912 = vld [vmem:[%s7 + $0x18] sm:$0xff]
        %v913 = vld [vmem:[%s7 + $0x20] sm:$0xff]
        %v914 = vld [vmem:[%s7 + $0x28] sm:$0xff]
        %v915 = vld [vmem:[%s7 + $0x30] sm:$0xff]
        %v916 = vld [vmem:[%s7 + $0x38] sm:$0xff]
        %v917 = vld [vmem:[%s7 + $0x40] sm:$0xff]
        %v918 = vld [vmem:[%s7 + $0x48] sm:$0xff]
        %v919 = vld [vmem:[%s7 + $0x50] sm:$0xff]
        %v920 = vld [vmem:[%s7 + $0x58] sm:$0xff]
        %v921 = vld [vmem:[%s7 + $0x60] sm:$0xff]
        %v922 = vld [vmem:[%s7 + $0x68] sm:$0xff]
        %v923 = vld [vmem:[%s7 + $0x70] sm:$0xff]
        %v924 = vld [vmem:[%s7 + $0x78] sm:$0xff]
        %v925 = vld [vmem:[%s8] sm:$0x3]
        %v927 = vlaneseq
        %v928 = vshrl.u32 %v927, 7
        %v929 = vsub.s32 0, %v928
        %v930 = vrot.slane %v925, %v929
        %v931 = vlaneseq
        %v932 = vshrl.u32 %v931, 7
        %v933 = vsub.s32 1, %v932
        %v934 = vrot.slane %v925, %v933
        %v953 = vunpack.c.l.b16 %v909
        %v954 = vunpack.c.h.b16 %v909
        %v955 = vunpack.c.l.b16 %v910
        %v956 = vunpack.c.h.b16 %v910
        %v957 = vunpack.c.l.b16 %v911
        %v958 = vunpack.c.h.b16 %v911
        %v959 = vunpack.c.l.b16 %v912
        %v960 = vunpack.c.h.b16 %v912
        %v961 = vunpack.c.l.b16 %v913
        %v962 = vunpack.c.h.b16 %v913
        %v963 = vunpack.c.l.b16 %v914
        %v964 = vunpack.c.h.b16 %v914
        %v965 = vunpack.c.l.b16 %v915
        %v966 = vunpack.c.h.b16 %v915
        %v967 = vunpack.c.l.b16 %v916
        %v968 = vunpack.c.h.b16 %v916
        %v969 = vunpack.c.l.b16 %v917
        %v970 = vunpack.c.h.b16 %v917
        %v971 = vunpack.c.l.b16 %v918
        %v972 = vunpack.c.h.b16 %v918
        %v973 = vunpack.c.l.b16 %v919
        %v974 = vunpack.c.h.b16 %v919
        %v975 = vunpack.c.l.b16 %v920
        %v976 = vunpack.c.h.b16 %v920
        %v977 = vunpack.c.l.b16 %v921
        %v978 = vunpack.c.h.b16 %v921
        %v979 = vunpack.c.l.b16 %v922
        %v980 = vunpack.c.h.b16 %v922
        %v981 = vunpack.c.l.b16 %v923
        %v982 = vunpack.c.h.b16 %v923
        %v983 = vunpack.c.l.b16 %v924
        %v984 = vunpack.c.h.b16 %v924
        %v985 = vpack.c.b16 %v955, %v953
        %v986 = vpack.c.b16 %v956, %v954
        %v987 = vpack.c.b16 %v959, %v957
        %v988 = vpack.c.b16 %v960, %v958
        %v989 = vpack.c.b16 %v963, %v961
        %v990 = vpack.c.b16 %v964, %v962
        %v991 = vpack.c.b16 %v967, %v965
        %v992 = vpack.c.b16 %v968, %v966
        %v993 = vpack.c.b16 %v971, %v969
        %v994 = vpack.c.b16 %v972, %v970
        %v995 = vpack.c.b16 %v975, %v973
        %v996 = vpack.c.b16 %v976, %v974
        %v997 = vpack.c.b16 %v979, %v977
        %v998 = vpack.c.b16 %v980, %v978
        %v999 = vpack.c.b16 %v983, %v981
        %v1000 = vpack.c.b16 %v984, %v982
        %1017 = vmatprep.subr.bf16.mxu0 %v986
        %1018 = vmatpush1.bf16.msra.mxu0 %v985
        %1019 = vmatprep.subr.bf16.mxu0 %v988
        %1020 = vmatpush1.bf16.msra.mxu0 %v987
        %1021 = vmatprep.subr.bf16.mxu0 %v990
        %1022 = vmatpush1.bf16.msra.mxu0 %v989
        %1023 = vmatprep.subr.bf16.mxu0 %v992
        %1024 = vmatpush1.bf16.msra.mxu0 %v991
        %1025 = vmatprep.subr.bf16.mxu0 %v994
        %1026 = vmatpush1.bf16.msra.mxu0 %v993
        %1027 = vmatprep.subr.bf16.mxu0 %v996
        %1028 = vmatpush1.bf16.msra.mxu0 %v995
        %1029 = vmatprep.subr.bf16.mxu0 %v998
        %1030 = vmatpush1.bf16.msra.mxu0 %v997
        %1031 = vmatprep.subr.bf16.mxu0 %v1000
        %1032 = vmatpush1.bf16.msra.mxu0 %v999
        %1033 = vmatprep.subr.bf16.mxu0 0
        %1034 = vmatpush1.bf16.msra.mxu0 0
        %1035 = vmatprep.subr.bf16.mxu0 0
        %1036 = vmatpush1.bf16.msra.mxu0 0
        %1037 = vmatprep.subr.bf16.mxu0 0
        %1038 = vmatpush1.bf16.msra.mxu0 0
        %1039 = vmatprep.subr.bf16.mxu0 0
        %1040 = vmatpush1.bf16.msra.mxu0 0
        %1041 = vmatprep.subr.bf16.mxu0 0
        %1042 = vmatpush1.bf16.msra.mxu0 0
        %1043 = vmatprep.subr.bf16.mxu0 0
        %1044 = vmatpush1.bf16.msra.mxu0 0
        %1045 = vmatprep.subr.bf16.mxu0 0
        %1046 = vmatpush1.bf16.msra.mxu0 0
        %1047 = vmatprep.subr.bf16.mxu0 0
        %1048 = vmatpush1.bf16.msra.mxu0 0
        %1049 = vmatprep.mubr.bf16.mxu0 0
        %1050 = vmatmul.mubr.bf16.gmra.mrb[0].mxu0 %v907
        %v1051 = vpop.f32.mrb[0].mxu0
        %v1052 = vadd.f32 %v930, %v1051
        %v1053 = vpop.f32.mrb[0].mxu0
        %v1054 = vadd.f32 %v934, %v1053
        %v1055 = vpop.f32.mrb[0].mxu0
        %v1056 = vadd.f32 %v930, %v1055
        %v1057 = vpop.f32.mrb[0].mxu0
        %v1058 = vadd.f32 %v934, %v1057
        %1059 = vmatprep.mubr.bf16.mxu0 0
        %1060 = vmatmul.mubr.bf16.gmra.mrb[0].mxu0 %v908
        %v1061 = vpop.f32.mrb[0].mxu0
        %v1062 = vadd.f32 %v930, %v1061
        %v1063 = vpop.f32.mrb[0].mxu0
        %v1064 = vadd.f32 %v934, %v1063
        %v1065 = vpop.f32.mrb[0].mxu0
        %v1066 = vadd.f32 %v930, %v1065
        %v1067 = vpop.f32.mrb[0].mxu0
        %v1068 = vadd.f32 %v934, %v1067
        %1069 = vdwg.mxu0
        %v1070 = vpack.c.bf16 %v1056, %v1052
        %v1071 = vpack.c.bf16 %v1058, %v1054
        %v1072 = vpack.c.bf16 %v1066, %v1062
        %v1073 = vpack.c.bf16 %v1068, %v1064
        %v1074 = vmul.bf16 %v1070, %v1070
        %v1075 = vmul.bf16 %v1071, %v1071
        %v1076 = vmul.bf16 %v1072, %v1072
        %v1077 = vmul.bf16 %v1073, %v1073
        %v1078 = vmul.bf16 %v1074, %v1070
        %v1079 = vmul.bf16 %v1075, %v1071
        %v1080 = vmul.bf16 %v1076, %v1072
        %v1081 = vmul.bf16 %v1077, %v1073
        %v1082 = vmul.bf16 %v1078, 1027030327
        %v1083 = vmul.bf16 %v1079, 1027030327
        %v1084 = vmul.bf16 %v1080, 1027030327
        %v1085 = vmul.bf16 %v1081, 1027030327
        %v1086 = vadd.bf16 %v1070, %v1082
        %v1087 = vadd.bf16 %v1071, %v1083
        %v1088 = vadd.bf16 %v1072, %v1084
        %v1089 = vadd.bf16 %v1073, %v1085
        %v1090 = vmul.bf16 %v1086, 1061961548
        %v1091 = vmul.bf16 %v1087, 1061961548
        %v1092 = vmul.bf16 %v1088, 1061961548
        %v1093 = vmul.bf16 %v1089, 1061961548
        %v1094 = vtanh.bf16.pop %v1090
        %v1095 = vtanh.bf16.pop %v1091
        %v1096 = vtanh.bf16.pop %v1092
        %v1097 = vtanh.bf16.pop %v1093
        %v1098 = vadd.bf16 %v1094, 1065369472
        %v1099 = vadd.bf16 %v1095, 1065369472
        %v1100 = vadd.bf16 %v1096, 1065369472
        %v1101 = vadd.bf16 %v1097, 1065369472
        %v1102 = vmul.bf16 %v1070, %v1098
        %v1103 = vmul.bf16 %v1071, %v1099
        %v1104 = vmul.bf16 %v1072, %v1100
        %v1105 = vmul.bf16 %v1073, %v1101
        %v1106 = vld [vmem:[#allocation4] sm:$0xf]
        %v1107 = vld [vmem:[#allocation4 + $0x4] sm:$0xf]
        %v1108 = vld [vmem:[#allocation4 + $0x8] sm:$0xf]
        %v1109 = vld [vmem:[#allocation4 + $0xc] sm:$0xf]
        %v1110 = vld [vmem:[#allocation4 + $0x10] sm:$0xf]
        %v1111 = vld [vmem:[#allocation4 + $0x14] sm:$0xf]
        %v1112 = vld [vmem:[#allocation4 + $0x18] sm:$0xf]
        %v1113 = vld [vmem:[#allocation4 + $0x1c] sm:$0xf]
        %v1114 = vld [vmem:[#allocation4 + $0x20] sm:$0xf]
        %v1115 = vld [vmem:[#allocation4 + $0x24] sm:$0xf]
        %v1116 = vld [vmem:[#allocation4 + $0x28] sm:$0xf]
        %v1117 = vld [vmem:[#allocation4 + $0x2c] sm:$0xf]
        %v1118 = vld [vmem:[#allocation4 + $0x30] sm:$0xf]
        %v1119 = vld [vmem:[#allocation4 + $0x34] sm:$0xf]
        %v1120 = vld [vmem:[#allocation4 + $0x38] sm:$0xf]
        %v1121 = vld [vmem:[#allocation4 + $0x3c] sm:$0xf]
        %v1122 = vld [vmem:[#allocation4 + $0x40] sm:$0xf]
        %v1123 = vld [vmem:[#allocation4 + $0x44] sm:$0xf]
        %v1124 = vld [vmem:[#allocation4 + $0x48] sm:$0xf]
        %v1125 = vld [vmem:[#allocation4 + $0x4c] sm:$0xf]
        %v1126 = vld [vmem:[#allocation4 + $0x50] sm:$0xf]
        %v1127 = vld [vmem:[#allocation4 + $0x54] sm:$0xf]
        %v1128 = vld [vmem:[#allocation4 + $0x58] sm:$0xf]
        %v1129 = vld [vmem:[#allocation4 + $0x5c] sm:$0xf]
        %v1130 = vld [vmem:[#allocation4 + $0x60] sm:$0xf]
        %v1131 = vld [vmem:[#allocation4 + $0x64] sm:$0xf]
        %v1132 = vld [vmem:[#allocation4 + $0x68] sm:$0xf]
        %v1133 = vld [vmem:[#allocation4 + $0x6c] sm:$0xf]
        %v1134 = vld [vmem:[#allocation4 + $0x70] sm:$0xf]
        %v1135 = vld [vmem:[#allocation4 + $0x74] sm:$0xf]
        %v1136 = vld [vmem:[#allocation4 + $0x78] sm:$0xf]
        %v1137 = vld [vmem:[#allocation4 + $0x7c] sm:$0xf]
        %v1138 = vld [vmem:[%s10] sm:$0x1]
        %v1140 = vlaneseq
        %v1141 = vshrl.u32 %v1140, 7
        %v1142 = vsub.s32 0, %v1141
        %v1143 = vrot.slane %v1138, %v1142
        %v1177 = vunpack.c.l.b16 %v1106
        %v1178 = vunpack.c.l.b16 %v1107
        %v1179 = vunpack.c.l.b16 %v1108
        %v1180 = vunpack.c.l.b16 %v1109
        %v1181 = vunpack.c.l.b16 %v1110
        %v1182 = vunpack.c.l.b16 %v1111
        %v1183 = vunpack.c.l.b16 %v1112
        %v1184 = vunpack.c.l.b16 %v1113
        %v1185 = vunpack.c.l.b16 %v1114
        %v1186 = vunpack.c.l.b16 %v1115
        %v1187 = vunpack.c.l.b16 %v1116
        %v1188 = vunpack.c.l.b16 %v1117
        %v1189 = vunpack.c.l.b16 %v1118
        %v1190 = vunpack.c.l.b16 %v1119
        %v1191 = vunpack.c.l.b16 %v1120
        %v1192 = vunpack.c.l.b16 %v1121
        %v1193 = vunpack.c.l.b16 %v1122
        %v1194 = vunpack.c.l.b16 %v1123
        %v1195 = vunpack.c.l.b16 %v1124
        %v1196 = vunpack.c.l.b16 %v1125
        %v1197 = vunpack.c.l.b16 %v1126
        %v1198 = vunpack.c.l.b16 %v1127
        %v1199 = vunpack.c.l.b16 %v1128
        %v1200 = vunpack.c.l.b16 %v1129
        %v1201 = vunpack.c.l.b16 %v1130
        %v1202 = vunpack.c.l.b16 %v1131
        %v1203 = vunpack.c.l.b16 %v1132
        %v1204 = vunpack.c.l.b16 %v1133
        %v1205 = vunpack.c.l.b16 %v1134
        %v1206 = vunpack.c.l.b16 %v1135
        %v1207 = vunpack.c.l.b16 %v1136
        %v1208 = vunpack.c.l.b16 %v1137
        %v1209 = vpack.c.b16 %v1178, %v1177
        %v1210 = vpack.c.b16 %v1180, %v1179
        %v1211 = vpack.c.b16 %v1182, %v1181
        %v1212 = vpack.c.b16 %v1184, %v1183
        %v1213 = vpack.c.b16 %v1186, %v1185
        %v1214 = vpack.c.b16 %v1188, %v1187
        %v1215 = vpack.c.b16 %v1190, %v1189
        %v1216 = vpack.c.b16 %v1192, %v1191
        %v1217 = vpack.c.b16 %v1194, %v1193
        %v1218 = vpack.c.b16 %v1196, %v1195
        %v1219 = vpack.c.b16 %v1198, %v1197
        %v1220 = vpack.c.b16 %v1200, %v1199
        %v1221 = vpack.c.b16 %v1202, %v1201
        %v1222 = vpack.c.b16 %v1204, %v1203
        %v1223 = vpack.c.b16 %v1206, %v1205
        %v1224 = vpack.c.b16 %v1208, %v1207
        %1241 = vmatprep.subr.bf16.mxu0 0
        %1242 = vmatpush1.bf16.msra.mxu0 %v1209
        %1243 = vmatprep.subr.bf16.mxu0 0
        %1244 = vmatpush1.bf16.msra.mxu0 %v1210
        %1245 = vmatprep.subr.bf16.mxu0 0
        %1246 = vmatpush1.bf16.msra.mxu0 %v1211
        %1247 = vmatprep.subr.bf16.mxu0 0
        %1248 = vmatpush1.bf16.msra.mxu0 %v1212
        %1249 = vmatprep.subr.bf16.mxu0 0
        %1250 = vmatpush1.bf16.msra.mxu0 %v1213
        %1251 = vmatprep.subr.bf16.mxu0 0
        %1252 = vmatpush1.bf16.msra.mxu0 %v1214
        %1253 = vmatprep.subr.bf16.mxu0 0
        %1254 = vmatpush1.bf16.msra.mxu0 %v1215
        %1255 = vmatprep.subr.bf16.mxu0 0
        %1256 = vmatpush1.bf16.msra.mxu0 %v1216
        %1257 = vmatprep.subr.bf16.mxu0 0
        %1258 = vmatpush1.bf16.msra.mxu0 %v1217
        %1259 = vmatprep.subr.bf16.mxu0 0
        %1260 = vmatpush1.bf16.msra.mxu0 %v1218
        %1261 = vmatprep.subr.bf16.mxu0 0
        %1262 = vmatpush1.bf16.msra.mxu0 %v1219
        %1263 = vmatprep.subr.bf16.mxu0 0
        %1264 = vmatpush1.bf16.msra.mxu0 %v1220
        %1265 = vmatprep.subr.bf16.mxu0 0
        %1266 = vmatpush1.bf16.msra.mxu0 %v1221
        %1267 = vmatprep.subr.bf16.mxu0 0
        %1268 = vmatpush1.bf16.msra.mxu0 %v1222
        %1269 = vmatprep.subr.bf16.mxu0 0
        %1270 = vmatpush1.bf16.msra.mxu0 %v1223
        %1271 = vmatprep.subr.bf16.mxu0 0
        %1272 = vmatpush1.bf16.msra.mxu0 %v1224
        %1273 = vmatprep.mubr.bf16.mxu0 %v1103
        %1274 = vmatmul.mubr.bf16.gmra.mrb[0].mxu0 %v1102
        %v1275 = vpop.f32.mrb[0].mxu0
        %v1276 = vadd.f32 %v1143, %v1275
        %v1277 = vpop.f32.mrb[0].mxu0
        %v1278 = vpop.f32.mrb[0].mxu0
        %v1279 = vadd.f32 %v1143, %v1278
        %v1280 = vpop.f32.mrb[0].mxu0
        %1281 = vmatprep.mubr.bf16.mxu0 %v1105
        %1282 = vmatmul.mubr.bf16.gmra.mrb[0].mxu0 %v1104
        %v1283 = vpop.f32.mrb[0].mxu0
        %v1284 = vadd.f32 %v1143, %v1283
        %v1285 = vpop.f32.mrb[0].mxu0
        %v1286 = vpop.f32.mrb[0].mxu0
        %v1287 = vadd.f32 %v1143, %v1286
        %v1288 = vpop.f32.mrb[0].mxu0
        %1289 = vdwg.mxu0
        %v1290 = vpack.c.bf16 %v1279, %v1276
        %v1291 = vpack.c.bf16 %v1287, %v1284
        %v1292 = vmul.bf16 %v1290, %v1290
        %v1293 = vmul.bf16 %v1291, %v1291
        %v1294 = vmul.bf16 %v1292, %v1290
        %v1295 = vmul.bf16 %v1293, %v1291
        %v1296 = vmul.bf16 %v1294, 1027030327
        %v1297 = vmul.bf16 %v1295, 1027030327
        %v1298 = vadd.bf16 %v1290, %v1296
        %v1299 = vadd.bf16 %v1291, %v1297
        %v1300 = vmul.bf16 %v1298, 1061961548
        %v1301 = vmul.bf16 %v1299, 1061961548
        %v1302 = vtanh.bf16.pop %v1300
        %v1303 = vtanh.bf16.pop %v1301
        %v1304 = vadd.bf16 %v1302, 1065369472
        %v1305 = vadd.bf16 %v1303, 1065369472
        %v1306 = vmul.bf16 %v1290, %v1304
        %v1307 = vmul.bf16 %v1291, %v1305
        %v1308 = vld [vmem:[%s11] sm:$0xf]
        %v1309 = vld [vmem:[%s11 + $0x4] sm:$0xf]
        %v1310 = vld [vmem:[%s11 + $0x8] sm:$0xf]
        %v1311 = vld [vmem:[%s11 + $0xc] sm:$0xf]
        %v1312 = vld [vmem:[%s11 + $0x10] sm:$0xf]
        %v1313 = vld [vmem:[%s11 + $0x14] sm:$0xf]
        %v1314 = vld [vmem:[%s11 + $0x18] sm:$0xf]
        %v1315 = vld [vmem:[%s11 + $0x1c] sm:$0xf]
        %v1316 = vld [vmem:[%s11 + $0x20] sm:$0xf]
        %v1317 = vld [vmem:[%s11 + $0x24] sm:$0xf]
        %v1318 = vld [vmem:[%s11 + $0x28] sm:$0xf]
        %v1319 = vld [vmem:[%s11 + $0x2c] sm:$0xf]
        %v1320 = vld [vmem:[%s11 + $0x30] sm:$0xf]
        %v1321 = vld [vmem:[%s11 + $0x34] sm:$0xf]
        %v1322 = vld [vmem:[%s11 + $0x38] sm:$0xf]
        %v1323 = vld [vmem:[%s11 + $0x3c] sm:$0xf]
        %v1324 = vld [vmem:[%s12] sm:$0x1]
        %v1326 = vlaneseq
        %v1327 = vshrl.u32 %v1326, 7
        %v1328 = vsub.s32 0, %v1327
        %v1329 = vrot.slane %v1324, %v1328
        %v1347 = vunpack.c.l.b16 %v1308
        %v1348 = vunpack.c.l.b16 %v1309
        %v1349 = vunpack.c.l.b16 %v1310
        %v1350 = vunpack.c.l.b16 %v1311
        %v1351 = vunpack.c.l.b16 %v1312
        %v1352 = vunpack.c.l.b16 %v1313
        %v1353 = vunpack.c.l.b16 %v1314
        %v1354 = vunpack.c.l.b16 %v1315
        %v1355 = vunpack.c.l.b16 %v1316
        %v1356 = vunpack.c.l.b16 %v1317
        %v1357 = vunpack.c.l.b16 %v1318
        %v1358 = vunpack.c.l.b16 %v1319
        %v1359 = vunpack.c.l.b16 %v1320
        %v1360 = vunpack.c.l.b16 %v1321
        %v1361 = vunpack.c.l.b16 %v1322
        %v1362 = vunpack.c.l.b16 %v1323
        %v1363 = vpack.c.b16 %v1348, %v1347
        %v1364 = vpack.c.b16 %v1350, %v1349
        %v1365 = vpack.c.b16 %v1352, %v1351
        %v1366 = vpack.c.b16 %v1354, %v1353
        %v1367 = vpack.c.b16 %v1356, %v1355
        %v1368 = vpack.c.b16 %v1358, %v1357
        %v1369 = vpack.c.b16 %v1360, %v1359
        %v1370 = vpack.c.b16 %v1362, %v1361
        %1379 = vmatprep.subr.bf16.mxu0 0
        %1380 = vmatpush1.bf16.msra.mxu0 %v1363
        %1381 = vmatprep.subr.bf16.mxu0 0
        %1382 = vmatpush1.bf16.msra.mxu0 %v1364
        %1383 = vmatprep.subr.bf16.mxu0 0
        %1384 = vmatpush1.bf16.msra.mxu0 %v1365
        %1385 = vmatprep.subr.bf16.mxu0 0
        %1386 = vmatpush1.bf16.msra.mxu0 %v1366
        %1387 = vmatprep.subr.bf16.mxu0 0
        %1388 = vmatpush1.bf16.msra.mxu0 %v1367
        %1389 = vmatprep.subr.bf16.mxu0 0
        %1390 = vmatpush1.bf16.msra.mxu0 %v1368
        %1391 = vmatprep.subr.bf16.mxu0 0
        %1392 = vmatpush1.bf16.msra.mxu0 %v1369
        %1393 = vmatprep.subr.bf16.mxu0 0
        %1394 = vmatpush1.bf16.msra.mxu0 %v1370
        %1395 = vmatprep.subr.bf16.mxu0 0
        %1396 = vmatpush1.bf16.msra.mxu0 0
        %1397 = vmatprep.subr.bf16.mxu0 0
        %1398 = vmatpush1.bf16.msra.mxu0 0
        %1399 = vmatprep.subr.bf16.mxu0 0
        %1400 = vmatpush1.bf16.msra.mxu0 0
        %1401 = vmatprep.subr.bf16.mxu0 0
        %1402 = vmatpush1.bf16.msra.mxu0 0
        %1403 = vmatprep.subr.bf16.mxu0 0
        %1404 = vmatpush1.bf16.msra.mxu0 0
        %1405 = vmatprep.subr.bf16.mxu0 0
        %1406 = vmatpush1.bf16.msra.mxu0 0
        %1407 = vmatprep.subr.bf16.mxu0 0
        %1408 = vmatpush1.bf16.msra.mxu0 0
        %1409 = vmatprep.subr.bf16.mxu0 0
        %1410 = vmatpush1.bf16.msra.mxu0 0
        %1411 = vmatprep.mubr.bf16.mxu0 0
        %1412 = vmatmul.mubr.bf16.gmra.mrb[0].mxu0 %v1306
        %v1413 = vpop.f32.mrb[0].mxu0
        %v1414 = vadd.f32 %v1329, %v1413
        %v1415 = vpop.f32.mrb[0].mxu0
        %v1416 = vpop.f32.mrb[0].mxu0
        %v1417 = vadd.f32 %v1329, %v1416
        %v1418 = vpop.f32.mrb[0].mxu0
        %1419 = vmatprep.mubr.bf16.mxu0 0
        %1420 = vmatmul.mubr.bf16.gmra.mrb[0].mxu0 %v1307
        %v1421 = vpop.f32.mrb[0].mxu0
        %v1422 = vadd.f32 %v1329, %v1421
        %v1423 = vpop.f32.mrb[0].mxu0
        %v1424 = vpop.f32.mrb[0].mxu0
        %v1425 = vadd.f32 %v1329, %v1424
        %v1426 = vpop.f32.mrb[0].mxu0
        %1427 = vdwg.mxu0
        %v1428 = vpack.c.bf16 %v1417, %v1414
        %v1429 = vpack.c.bf16 %v1425, %v1422
        %v1430 = vmul.bf16 %v1428, %v1428
        %v1431 = vmul.bf16 %v1429, %v1429
        %v1432 = vmul.bf16 %v1430, %v1428
        %v1433 = vmul.bf16 %v1431, %v1429
        %v1434 = vmul.bf16 %v1432, 1027030327
        %v1435 = vmul.bf16 %v1433, 1027030327
        %v1436 = vadd.bf16 %v1428, %v1434
        %v1437 = vadd.bf16 %v1429, %v1435
        %v1438 = vmul.bf16 %v1436, 1061961548
        %v1439 = vmul.bf16 %v1437, 1061961548
        %v1440 = vtanh.bf16.pop %v1438
        %v1441 = vtanh.bf16.pop %v1439
        %v1442 = vadd.bf16 %v1440, 1065369472
        %v1443 = vadd.bf16 %v1441, 1065369472
        %v1444 = vmul.bf16 %v1428, %v1442
        %v1445 = vmul.bf16 %v1429, %v1443
        %v1446 = vld [vmem:[%s13] sm:$0xf]
        %v1447 = vld [vmem:[%s13 + $0x4] sm:$0xf]
        %v1448 = vld [vmem:[%s13 + $0x8] sm:$0xf]
        %v1449 = vld [vmem:[%s13 + $0xc] sm:$0xf]
        %v1450 = vld [vmem:[%s13 + $0x10] sm:$0xf]
        %v1451 = vld [vmem:[%s13 + $0x14] sm:$0xf]
        %v1452 = vld [vmem:[%s13 + $0x18] sm:$0xf]
        %v1453 = vld [vmem:[%s13 + $0x1c] sm:$0xf]
        %v1454 = vld [vmem:[%s14] sm:$0x1]
        %v1456 = vlaneseq
        %v1457 = vshrl.u32 %v1456, 7
        %v1458 = vsub.s32 0, %v1457
        %v1459 = vrot.slane %v1454, %v1458
        %v1469 = vunpack.c.l.b16 %v1446
        %v1470 = vunpack.c.l.b16 %v1447
        %v1471 = vunpack.c.l.b16 %v1448
        %v1472 = vunpack.c.l.b16 %v1449
        %v1473 = vunpack.c.l.b16 %v1450
        %v1474 = vunpack.c.l.b16 %v1451
        %v1475 = vunpack.c.l.b16 %v1452
        %v1476 = vunpack.c.l.b16 %v1453
        %v1477 = vpack.c.b16 %v1470, %v1469
        %v1478 = vpack.c.b16 %v1472, %v1471
        %v1479 = vpack.c.b16 %v1474, %v1473
        %v1480 = vpack.c.b16 %v1476, %v1475
        %v1486 = vsel %vm835, %v1444, 0
        %v1489 = vsel %vm835, %v1445, 0
        %1491 = vmatprep.subr.bf16.mxu0 0
        %1492 = vmatpush1.bf16.msra.mxu0 %v1477
        %1493 = vmatprep.subr.bf16.mxu0 0
        %1494 = vmatpush1.bf16.msra.mxu0 %v1478
        %1495 = vmatprep.subr.bf16.mxu0 0
        %1496 = vmatpush1.bf16.msra.mxu0 %v1479
        %1497 = vmatprep.subr.bf16.mxu0 0
        %1498 = vmatpush1.bf16.msra.mxu0 %v1480
        %1499 = vmatprep.subr.bf16.mxu0 0
        %1500 = vmatpush1.bf16.msra.mxu0 0
        %1501 = vmatprep.subr.bf16.mxu0 0
        %1502 = vmatpush1.bf16.msra.mxu0 0
        %1503 = vmatprep.subr.bf16.mxu0 0
        %1504 = vmatpush1.bf16.msra.mxu0 0
        %1505 = vmatprep.subr.bf16.mxu0 0
        %1506 = vmatpush1.bf16.msra.mxu0 0
        %1507 = vmatprep.subr.bf16.mxu0 0
        %1508 = vmatpush1.bf16.msra.mxu0 0
        %1509 = vmatprep.subr.bf16.mxu0 0
        %1510 = vmatpush1.bf16.msra.mxu0 0
        %1511 = vmatprep.subr.bf16.mxu0 0
        %1512 = vmatpush1.bf16.msra.mxu0 0
        %1513 = vmatprep.subr.bf16.mxu0 0
        %1514 = vmatpush1.bf16.msra.mxu0 0
        %1515 = vmatprep.subr.bf16.mxu0 0
        %1516 = vmatpush1.bf16.msra.mxu0 0
        %1517 = vmatprep.subr.bf16.mxu0 0
        %1518 = vmatpush1.bf16.msra.mxu0 0
        %1519 = vmatprep.subr.bf16.mxu0 0
        %1520 = vmatpush1.bf16.msra.mxu0 0
        %1521 = vmatprep.subr.bf16.mxu0 0
        %1522 = vmatpush1.bf16.msra.mxu0 0
        %1523 = vmatprep.mubr.bf16.mxu0 0
        %1524 = vmatmul.mubr.bf16.gmra.mrb[0].mxu0 %v1486
        %v1525 = vpop.f32.mrb[0].mxu0
        %v1526 = vadd.f32 %v1459, %v1525
        %v1527 = vpop.f32.mrb[0].mxu0
        %v1528 = vpop.f32.mrb[0].mxu0
        %v1529 = vadd.f32 %v1459, %v1528
        %v1530 = vpop.f32.mrb[0].mxu0
        %1531 = vmatprep.mubr.bf16.mxu0 0
        %1532 = vmatmul.mubr.bf16.gmra.mrb[0].mxu0 %v1489
        %v1533 = vpop.f32.mrb[0].mxu0
        %v1534 = vadd.f32 %v1459, %v1533
        %v1535 = vpop.f32.mrb[0].mxu0
        %v1536 = vpop.f32.mrb[0].mxu0
        %v1537 = vadd.f32 %v1459, %v1536
        %v1538 = vpop.f32.mrb[0].mxu0
        %1539 = vdwg.mxu0
        %v1540 = vpack.c.bf16 %v1529, %v1526
        %v1541 = vpack.c.bf16 %v1537, %v1534
        %v1542 = vmul.bf16 %v1540, %v1540
        %v1543 = vmul.bf16 %v1541, %v1541
        %v1544 = vmul.bf16 %v1542, %v1540
        %v1545 = vmul.bf16 %v1543, %v1541
        %v1546 = vmul.bf16 %v1544, 1027030327
        %v1547 = vmul.bf16 %v1545, 1027030327
        %v1548 = vadd.bf16 %v1540, %v1546
        %v1549 = vadd.bf16 %v1541, %v1547
        %v1550 = vmul.bf16 %v1548, 1061961548
        %v1551 = vmul.bf16 %v1549, 1061961548
        %v1552 = vtanh.bf16.pop %v1550
        %v1553 = vtanh.bf16.pop %v1551
        %v1554 = vadd.bf16 %v1552, 1065369472
        %v1555 = vadd.bf16 %v1553, 1065369472
        %v1556 = vmul.bf16 %v1540, %v1554
        %v1557 = vmul.bf16 %v1541, %v1555
        %v1558 = vld [vmem:[%s15] sm:$0xf]
        %v1559 = vld [vmem:[%s15 + $0x4] sm:$0xf]
        %v1560 = vld [vmem:[%s15 + $0x8] sm:$0xf]
        %v1561 = vld [vmem:[%s15 + $0xc] sm:$0xf]
        %v1562 = vld [vmem:[%s16] sm:$0x1]
        %v1564 = vlaneseq
        %v1565 = vshrl.u32 %v1564, 7
        %v1566 = vsub.s32 0, %v1565
        %v1567 = vrot.slane %v1562, %v1566
        %v1573 = vunpack.c.l.b16 %v1558
        %v1574 = vunpack.c.l.b16 %v1559
        %v1575 = vunpack.c.l.b16 %v1560
        %v1576 = vunpack.c.l.b16 %v1561
        %v1577 = vpack.c.b16 %v1574, %v1573
        %v1578 = vpack.c.b16 %v1576, %v1575
        %v1582 = vsel %vm722, %v1556, 0
        %v1585 = vsel %vm722, %v1557, 0
        %1587 = vmatprep.subr.bf16.mxu0 0
        %1588 = vmatpush1.bf16.msra.mxu0 %v1577
        %1589 = vmatprep.subr.bf16.mxu0 0
        %1590 = vmatpush1.bf16.msra.mxu0 %v1578
        %1591 = vmatprep.subr.bf16.mxu0 0
        %1592 = vmatpush1.bf16.msra.mxu0 0
        %1593 = vmatprep.subr.bf16.mxu0 0
        %1594 = vmatpush1.bf16.msra.mxu0 0
        %1595 = vmatprep.subr.bf16.mxu0 0
        %1596 = vmatpush1.bf16.msra.mxu0 0
        %1597 = vmatprep.subr.bf16.mxu0 0
        %1598 = vmatpush1.bf16.msra.mxu0 0
        %1599 = vmatprep.subr.bf16.mxu0 0
        %1600 = vmatpush1.bf16.msra.mxu0 0
        %1601 = vmatprep.subr.bf16.mxu0 0
        %1602 = vmatpush1.bf16.msra.mxu0 0
        %1603 = vmatprep.subr.bf16.mxu0 0
        %1604 = vmatpush1.bf16.msra.mxu0 0
        %1605 = vmatprep.subr.bf16.mxu0 0
        %1606 = vmatpush1.bf16.msra.mxu0 0
        %1607 = vmatprep.subr.bf16.mxu0 0
        %1608 = vmatpush1.bf16.msra.mxu0 0
        %1609 = vmatprep.subr.bf16.mxu0 0
        %1610 = vmatpush1.bf16.msra.mxu0 0
        %1611 = vmatprep.subr.bf16.mxu0 0
        %1612 = vmatpush1.bf16.msra.mxu0 0
        %1613 = vmatprep.subr.bf16.mxu0 0
        %1614 = vmatpush1.bf16.msra.mxu0 0
        %1615 = vmatprep.subr.bf16.mxu0 0
        %1616 = vmatpush1.bf16.msra.mxu0 0
        %1617 = vmatprep.subr.bf16.mxu0 0
        %1618 = vmatpush1.bf16.msra.mxu0 0
        %1619 = vmatprep.mubr.bf16.mxu0 0
        %1620 = vmatmul.mubr.bf16.gmra.mrb[0].mxu0 %v1582
        %v1621 = vpop.f32.mrb[0].mxu0
        %v1622 = vadd.f32 %v1567, %v1621
        %v1623 = vpop.f32.mrb[0].mxu0
        %v1624 = vpop.f32.mrb[0].mxu0
        %v1625 = vadd.f32 %v1567, %v1624
        %v1626 = vpop.f32.mrb[0].mxu0
        %1627 = vmatprep.mubr.bf16.mxu0 0
        %1628 = vmatmul.mubr.bf16.gmra.mrb[0].mxu0 %v1585
        %v1629 = vpop.f32.mrb[0].mxu0
        %v1630 = vadd.f32 %v1567, %v1629
        %v1631 = vpop.f32.mrb[0].mxu0
        %v1632 = vpop.f32.mrb[0].mxu0
        %v1633 = vadd.f32 %v1567, %v1632
        %v1634 = vpop.f32.mrb[0].mxu0
        %1635 = vdwg.mxu0
        %v1636 = vpack.c.bf16 %v1625, %v1622
        %v1637 = vpack.c.bf16 %v1633, %v1630
        %v1640 = vunpack.c.l.b16 %v1636
        %v1641 = vunpack.c.h.b16 %v1636
        %v1642 = vunpack.c.l.b16 %v1637
        %v1643 = vunpack.c.h.b16 %v1637
        %v1644 = vpack.c.b16 %v1640, %v1640
        %v1645 = vpack.c.b16 %v1641, %v1641
        %v1646 = vpack.c.b16 %v1642, %v1642
        %v1647 = vpack.c.b16 %v1643, %v1643
        %1652 = vst [vmem:[%s580] sm:$0xf] %v1644
        %1653 = vst [vmem:[%s580 + $0x4] sm:$0xf] %v1645
        %1654 = vst [vmem:[%s580 + $0x8] sm:$0xf] %v1646
        %1655 = vst [vmem:[%s580 + $0xc] sm:$0xf] %v1647
        %s1656 = sand.u32 %s400, 1
        %s1657 = sand.u32 %s400, 1
        %s1658 = smul.addr %s1657, 16
        %s1659 = scalar_lea.vmem [#allocation6], %s1658
        // Predicated region
        $region97: #{mlp_forward.1} parent=87 // pred_check
          %p1660 = pneg %p410
        $region98: #{mlp_forward.1} parent=87 // pred_check_branch
          %1662 = sbr.rel (%p1660) target = $region100
        $region99: #{mlp_forward.1} parent=87 // pred_region
          %s1663 = smul.u32 4, %s30
          %s1664 = ssub.s32 6, %s1663
          %p1665 = scmp.lt.s32.totalorder %s1664, 4
          %s1666 = scalar_select %p1665, %s1664, 4
          %s1667 = smul.u32 64, %s1666
          %p1668 = scmp.ne.s32.totalorder 0, %s1667
          %s1669 = smul.addr %s1663, 4
          %s1670 = scalar_lea.vmem %s17, %s1669
          // Predicated region
          $region101: #{mlp_forward.1} parent=99 // pred_check
            %p1671 = pneg %p1668
          $region102: #{mlp_forward.1} parent=99 // pred_check_branch
            %1673 = sbr.rel (%p1671) target = $region104
          $region103: #{mlp_forward.1} parent=99 // pred_region
            // Predicated region
            $region105: #{mlp_forward.1} parent=103 // pred_check
              _
            $region106: #{mlp_forward.1} parent=103 // pred_check_branch
              %1675 = sbr.rel target = $region108
            $region107: #{mlp_forward.1} parent=103 // pred_region
              // Predicated region
              $region127: #{mlp_forward.1} parent=107 // pred_check
                _
              $region128: #{mlp_forward.1} parent=107 // pred_check_branch
                %1730 = sbr.rel (0) target = $region130
              $region129: #{mlp_forward.1} parent=107 // pred_region
                %s1732 = sshrl.u32 %s1666, 2
                // While loop
                $region131: #{mlp_forward.1} parent=129 // loop_pre_header
                  _
                $region132: #{mlp_forward.1} parent=129 // loop_header
                  %s1734 = sphi 0, %s1736
                  %p1735 = scmp.ge.s32.totalorder %s1734, %s1732
                  %s1739 = sphi 0, %s1752
                  %s1740 = sphi %s1659, %s1755
                  %s1741 = sphi %s1670, %s1756
                $region133: #{mlp_forward.1} parent=129 // loop_header_branch
                  %1738 = sbr.rel (%p1735) target = $region137
                $region134: #{mlp_forward.1} parent=129 // loop_body
                  %v1742 = vld [vmem:[%s1740] sm:$0xf]
                  %1743 = vst [vmem:[%s1741] sm:$0xf] %v1742
                  %v1744 = vld [vmem:[%s1740 + $0x4] sm:$0xf]
                  %1745 = vst [vmem:[%s1741 + $0x4] sm:$0xf] %v1744
                  %v1746 = vld [vmem:[%s1740 + $0x8] sm:$0xf]
                  %1747 = vst [vmem:[%s1741 + $0x8] sm:$0xf] %v1746
                  %v1748 = vld [vmem:[%s1740 + $0xc] sm:$0xf]
                  %1749 = vst [vmem:[%s1741 + $0xc] sm:$0xf] %v1748
                  %s1750 = sadd.s32 1, %s1739
                  %p1751 = scmp.ge.s32.totalorder %s1750, %s1732
                  %s1752 = scalar_select %p1751, 0, %s1750
                  %s1753 = smul.u32 %s1752, 16
                  %s1754 = smul.u32 %s1752, 16
                  %s1755 = scalar_lea.vmem %s1659, %s1753 [#allocation6]
                  %s1756 = scalar_lea.vmem %s1670, %s1754
                $region135: #{mlp_forward.1} parent=129 // loop_footer
                  %s1736 = sadd.s32 %s1734, 1
                $region136: #{mlp_forward.1} parent=129 // loop_footer_branch
                  %1733 = sbr.rel target = $region132
                $region137: #{mlp_forward.1} parent=129 // loop_exit
                  _
                %s1757 = sshrl.u32 %s1666, 2
                %s1758 = sand.u32 %s1666, 3
                %s1759 = smul.u32 %s1757, 4
                %s1760 = smul.u32 4, %s1759
                %s1761 = scalar_lea.vmem %s1659, %s1760 [#allocation6]
                %s1762 = smul.u32 4, %s1759
                %s1763 = scalar_lea.vmem %s1670, %s1762
                // While loop
                $region138: #{mlp_forward.1} parent=129 // loop_pre_header
                  _
                $region139: #{mlp_forward.1} parent=129 // loop_header
                  %s1765 = sphi 0, %s1767
                  %p1766 = scmp.ge.s32.totalorder %s1765, %s1758
                  %s1770 = sphi 0, %s1777
                  %s1771 = sphi %s1761, %s1780
                  %s1772 = sphi %s1763, %s1781
                $region140: #{mlp_forward.1} parent=129 // loop_header_branch
                  %1769 = sbr.rel (%p1766) target = $region144
                $region141: #{mlp_forward.1} parent=129 // loop_body
                  %v1773 = vld [vmem:[%s1771] sm:$0xf]
                  %1774 = vst [vmem:[%s1772] sm:$0xf] %v1773
                  %s1775 = sadd.s32 1, %s1770
                  %p1776 = scmp.ge.s32.totalorder %s1775, %s1758
                  %s1777 = scalar_select %p1776, 0, %s1775
                  %s1778 = smul.u32 %s1777, 4
                  %s1779 = smul.u32 %s1777, 4
                  %s1780 = scalar_lea.vmem %s1761, %s1778 [#allocation6]
                  %s1781 = scalar_lea.vmem %s1763, %s1779
                $region142: #{mlp_forward.1} parent=129 // loop_footer
                  %s1767 = sadd.s32 %s1765, 1
                $region143: #{mlp_forward.1} parent=129 // loop_footer_branch
                  %1764 = sbr.rel target = $region139
                $region144: #{mlp_forward.1} parent=129 // loop_exit
                  _
              $region130: #{mlp_forward.1} parent=107 // pred_fallthru
                _
            $region108: #{mlp_forward.1} parent=103 // pred_fallthru
              _
            // Predicated region
            $region109: #{mlp_forward.1} parent=103 // pred_check
              _
            $region110: #{mlp_forward.1} parent=103 // pred_check_branch
              %1677 = sbr.rel (0) target = $region112
            $region111: #{mlp_forward.1} parent=103 // pred_region
              %s1679 = sshrl.u32 %s1666, 2
              // While loop
              $region113: #{mlp_forward.1} parent=111 // loop_pre_header
                _
              $region114: #{mlp_forward.1} parent=111 // loop_header
                %s1681 = sphi 0, %s1683
                %p1682 = scmp.ge.s32.totalorder %s1681, %s1679
                %s1686 = sphi 0, %s1699
                %s1687 = sphi %s1659, %s1702
                %s1688 = sphi %s1670, %s1703
              $region115: #{mlp_forward.1} parent=111 // loop_header_branch
                %1685 = sbr.rel (%p1682) target = $region119
              $region116: #{mlp_forward.1} parent=111 // loop_body
                %v1689 = vld [vmem:[%s1687] sm:$0xf]
                %1690 = vst [vmem:[%s1688] sm:$0xf] %v1689
                %v1691 = vld [vmem:[%s1687 + $0x4] sm:$0xf]
                %1692 = vst [vmem:[%s1688 + $0x4] sm:$0xf] %v1691
                %v1693 = vld [vmem:[%s1687 + $0x8] sm:$0xf]
                %1694 = vst [vmem:[%s1688 + $0x8] sm:$0xf] %v1693
                %v1695 = vld [vmem:[%s1687 + $0xc] sm:$0xf]
                %1696 = vst [vmem:[%s1688 + $0xc] sm:$0xf] %v1695
                %s1697 = sadd.s32 1, %s1686
                %p1698 = scmp.ge.s32.totalorder %s1697, %s1679
                %s1699 = scalar_select %p1698, 0, %s1697
                %s1700 = smul.u32 %s1699, 16
                %s1701 = smul.u32 %s1699, 16
                %s1702 = scalar_lea.vmem %s1659, %s1700 [#allocation6]
                %s1703 = scalar_lea.vmem %s1670, %s1701
              $region117: #{mlp_forward.1} parent=111 // loop_footer
                %s1683 = sadd.s32 %s1681, 1
              $region118: #{mlp_forward.1} parent=111 // loop_footer_branch
                %1680 = sbr.rel target = $region114
              $region119: #{mlp_forward.1} parent=111 // loop_exit
                _
              %s1704 = sshrl.u32 %s1666, 2
              %s1705 = sand.u32 %s1666, 3
              %s1706 = smul.u32 %s1704, 4
              %s1707 = smul.u32 4, %s1706
              %s1708 = scalar_lea.vmem %s1659, %s1707 [#allocation6]
              %s1709 = smul.u32 4, %s1706
              %s1710 = scalar_lea.vmem %s1670, %s1709
              // While loop
              $region120: #{mlp_forward.1} parent=111 // loop_pre_header
                _
              $region121: #{mlp_forward.1} parent=111 // loop_header
                %s1712 = sphi 0, %s1714
                %p1713 = scmp.ge.s32.totalorder %s1712, %s1705
                %s1717 = sphi 0, %s1724
                %s1718 = sphi %s1708, %s1727
                %s1719 = sphi %s1710, %s1728
              $region122: #{mlp_forward.1} parent=111 // loop_header_branch
                %1716 = sbr.rel (%p1713) target = $region126
              $region123: #{mlp_forward.1} parent=111 // loop_body
                %v1720 = vld [vmem:[%s1718] sm:$0xf]
                %1721 = vst [vmem:[%s1719] sm:$0xf] %v1720
                %s1722 = sadd.s32 1, %s1717
                %p1723 = scmp.ge.s32.totalorder %s1722, %s1705
                %s1724 = scalar_select %p1723, 0, %s1722
                %s1725 = smul.u32 %s1724, 4
                %s1726 = smul.u32 %s1724, 4
                %s1727 = scalar_lea.vmem %s1708, %s1725 [#allocation6]
                %s1728 = scalar_lea.vmem %s1710, %s1726
              $region124: #{mlp_forward.1} parent=111 // loop_footer
                %s1714 = sadd.s32 %s1712, 1
              $region125: #{mlp_forward.1} parent=111 // loop_footer_branch
                %1711 = sbr.rel target = $region121
              $region126: #{mlp_forward.1} parent=111 // loop_exit
                _
            $region112: #{mlp_forward.1} parent=103 // pred_fallthru
              _
          $region104: #{mlp_forward.1} parent=99 // pred_fallthru
            _
          %1782 = vnop
        $region100: #{mlp_forward.1} parent=87 // pred_fallthru
          _
      $region88: #{mlp_forward.1} parent=5 // pred_fallthru
        _
      %p1783 = scmp.le.s32.totalorder 2, %s25
      // Predicated region
      $region145: #{mlp_forward.1} parent=5 // pred_check
        %p1784 = pneg %p1783
      $region146: #{mlp_forward.1} parent=5 // pred_check_branch
        %1786 = sbr.rel (%p1784) target = $region148
      $region147: #{mlp_forward.1} parent=5 // pred_region
        %s1787 = ssub.s32 %s25, 2
        // Predicated region
        $region149: #{mlp_forward.1} parent=147 // pred_check
          %p1788 = pneg %p416
        $region150: #{mlp_forward.1} parent=147 // pred_check_branch
          %1790 = sbr.rel (%p1788) target = $region152
        $region151: #{mlp_forward.1} parent=147 // pred_region
          %s1791 = sand.u32 %s401, 1
          %s1792 = sand.u32 %s401, 1
          %s1793 = smul.addr %s1792, 16
          %s1794 = scalar_lea.vmem [#allocation6], %s1793
        $region152: #{mlp_forward.1} parent=147 // pred_fallthru
          _
      $region148: #{mlp_forward.1} parent=5 // pred_fallthru
        _
    $region6: #{mlp_forward.1} parent=1 // loop_footer
      %s29 = sadd.s32 1, %s25
    $region7: #{mlp_forward.1} parent=1 // loop_footer_branch
      %24 = sbr.rel target = $region3
    $region8: #{mlp_forward.1} parent=1 // loop_exit
      _
    %1795 = vsyncpa [#allocation3], 1
    %s1796 = scalar_lea.sflag [#allocation3], 1
    %1797 = vsyncpa %s1796, 1
    %1798 = vsyncpa [#allocation5], 1

</llo_original>
